<compile_context>
chip_gen: v7x
topology: tpu7x:2x2x1
jax: 0.10.0
libtpu: 0.0.40
codegen_flags: <defaults>
</compile_context>

<pallas_src>
import functools
import math

import jax
import jax.numpy as jnp
from jax.experimental import pallas as pl
from jax.experimental.pallas import tpu as pltpu


# ----------------------------------------------------------------------------
# One-time hardware / capability introspection (cached).
# ----------------------------------------------------------------------------

@functools.lru_cache(maxsize=None)
def _device_kind() -> str:
    return jax.devices()[0].device_kind.lower()


@functools.lru_cache(maxsize=None)
def _num_tensorcores() -> int:
    kind = _device_kind()
    # v7x has 2 TensorCores per chip; v4/v5p megacore also split "parallel"
    # grid axes across two cores. v5e/v6e are single-core.
    if "v7" in kind or "v4" in kind or "v5p" in kind:
        return 2
    return 1


@functools.lru_cache(maxsize=None)
def _vmem_capacity_bytes() -> int:
    # Authoritative query; narrow fallback to a per-generation table if this
    # build cannot answer outside a kernel trace.
    try:
        return int(pltpu.get_tpu_info().vmem_capacity_bytes)
    except Exception:
        return (64 << 20) if "v7" in _device_kind() else (128 << 20)


@functools.lru_cache(maxsize=None)
def _single_buffer_supported() -> bool:
    """One-time capability probe: does this Pallas build accept
    pipeline_mode=pl.Buffered(1) on a replicated input block?"""
    def probe_kernel(x_ref, w_ref, o_ref):
        o_ref[...] = x_ref[...] + w_ref[...]

    try:
        with jax.ensure_compile_time_eval():
            f = pl.pallas_call(
                probe_kernel,
                out_shape=jax.ShapeDtypeStruct((16, 128), jnp.float32),
                grid_spec=pltpu.PrefetchScalarGridSpec(
                    num_scalar_prefetch=0,
                    grid=(2,),
                    in_specs=[
                        pl.BlockSpec((8, 128), lambda i: (i, 0)),
                        pl.BlockSpec((8, 128), lambda i: (0, 0),
                                     pipeline_mode=pl.Buffered(1)),
                    ],
                    out_specs=pl.BlockSpec((8, 128), lambda i: (i, 0)),
                ),
            )
            jax.block_until_ready(f(jnp.zeros((16, 128), jnp.float32),
                                    jnp.zeros((8, 128), jnp.float32)))
        return True
    except Exception:
        return False


# ----------------------------------------------------------------------------
# Tiling policy.
# ----------------------------------------------------------------------------

def _round_up(x: int, m: int) -> int:
    return ((x + m - 1) // m) * m


def _pick_tiling(batch: int, num_tc: int):
    """Returns (batch_tile, padded_batch).  batch_tile is always a multiple
    of 8 and padded_batch a multiple of batch_tile (pad handled wrapper-side)."""
    if num_tc >= 2 and batch >= 32:
        # Two TensorCores share the grid ("parallel"): give each core >= 2
        # pipelined iterations (>= 4 even grid steps) so prologue/epilogue DMA
        # of the x/noise/out streams is actually hidden.
        max_tile = 512
        tb = min(max_tile, max(8, _round_up(-(-batch // 4), 8)))
        steps = -(-batch // tb)
        if steps % 2:
            steps += 1
        steps = max(steps, 4)
    else:
        # Single TensorCore: extra grid steps are pure ~0.35us/step overhead,
        # so run the largest sublane-aligned tile that comfortably fits VMEM.
        max_tile = 1024
        tb = min(max_tile, max(8, _round_up(batch, 8)))
        steps = -(-batch // tb)
    return tb, steps * tb


# ----------------------------------------------------------------------------
# Kernel.
# ----------------------------------------------------------------------------

def _make_mlp_kernel(out_dims, *, negative_slope, compute_dtype,
                     elementwise_dtype, generate_noise_in_kernel):
    """Builds kernel(refs): x, w_1..w_L, packed_bias, (noise|seed), out."""
    num_layers = len(out_dims)
    two_pi = 2.0 * math.pi

    def kernel(*refs):
        x_ref = refs[0]
        w_refs = refs[1:1 + num_layers]
        b_ref = refs[1 + num_layers]            # packed (L, max_out) f32 biases
        rng_ref = refs[2 + num_layers]          # noise tile OR (1,) seed in SMEM
        out_ref = refs[3 + num_layers]

        h = x_ref[...]
        for i in range(num_layers):
            d = out_dims[i]
            # bf16 (or f32) operands into the MXU, always f32 accumulation.
            acc = jnp.dot(h.astype(compute_dtype), w_refs[i][...],
                          preferred_element_type=jnp.float32)
            if i < num_layers - 1:
                # Hidden layers: bias add + LeakyReLU(0.2) in the generation's
                # native elementwise dtype (bf16 on v6e/v7x, f32 on v5e).
                a = acc.astype(elementwise_dtype)
                a = a + b_ref[i:i + 1, :d].astype(elementwise_dtype)
                slope = jnp.asarray(negative_slope, a.dtype)
                h = jnp.where(a > 0, a, slope * a)
            else:
                # Final projection: bias add, noise add and output stay f32.
                h = acc + b_ref[i:i + 1, :d]

        if generate_noise_in_kernel:
            # Opt-in: draw N(0,1) on-chip (Box-Muller; exp/log/sqrt/cos land on
            # the otherwise idle EUP) instead of streaming it from HBM.
            # NOTE: different RNG stream than torch.randn / jax.random.normal.
            pltpu.prng_seed(rng_ref[0] + pl.program_id(0))

            def _uniform01(shape):
                bits = pltpu.bitcast(pltpu.prng_random_bits(shape), jnp.uint32)
                mant = (bits >> jnp.uint32(9)).astype(jnp.int32)   # 23 bits
                return mant.astype(jnp.float32) * jnp.float32(1.0 / (1 << 23))

            u1 = _uniform01(h.shape)
            u2 = _uniform01(h.shape)
            r = jnp.sqrt(-2.0 * jnp.log(u1 + jnp.float32(1e-12)))
            noise = r * jnp.cos(jnp.float32(two_pi) * u2)
        else:
            noise = rng_ref[...].astype(jnp.float32)

        # TODO(synk): for tiny z_dim this store is lane-sparse (masked vst on
        # 8 of 128 lanes); packing the tile into a (tb*z_dim/128, 128) lane-
        # dense slab needs an in-kernel sublane->lane reshape that does not
        # reliably lower on Mosaic, so we rely on large batch tiles and the
        # optional in-kernel noise (which removes the matching sparse load).
        out_ref[...] = (noise + h).astype(out_ref.dtype)

    return kernel


# ----------------------------------------------------------------------------
# pallas_call builder.
# ----------------------------------------------------------------------------

def _build_call(padded_batch, batch_tile, data_dim, z_dim, weights, bias_packed,
                out_dtype, *, generate_noise_in_kernel, elementwise_dtype,
                compute_dtype, negative_slope):
    num_layers = len(weights)
    out_dims = tuple(int(w.shape[1]) for w in weights)

    kernel = _make_mlp_kernel(
        out_dims, negative_slope=negative_slope, compute_dtype=compute_dtype,
        elementwise_dtype=elementwise_dtype,
        generate_noise_in_kernel=generate_noise_in_kernel)

    single_buf = _single_buffer_supported()
    wkw = dict(pipeline_mode=pl.Buffered(1)) if single_buf else {}

    # x / noise / out are tiled along the batch axis; every weight and the
    # single packed bias array are replicated to each grid step.
    in_specs = [pl.BlockSpec((batch_tile, data_dim), lambda i: (i, 0))]
    for w in weights:
        in_specs.append(pl.BlockSpec(w.shape, lambda i: (0, 0), **wkw))
    in_specs.append(pl.BlockSpec(bias_packed.shape, lambda i: (0, 0), **wkw))
    if generate_noise_in_kernel:
        in_specs.append(pl.BlockSpec(memory_space=pltpu.MemorySpace.SMEM))
    else:
        in_specs.append(pl.BlockSpec((batch_tile, z_dim), lambda i: (i, 0)))

    out_spec = pl.BlockSpec((batch_tile, z_dim), lambda i: (i, 0))

    # VMEM budget: resident weights/biases + (double-)buffered batch streams +
    # activation slack, with 2x headroom, capped generation-aware at ~87% of
    # the physical VMEM (matters on v7x's 64 MiB; v5e/v6e have 128 MiB).
    wbufs = 1 if single_buf else 2
    weight_bytes = sum(w.size * w.dtype.itemsize for w in weights)
    weight_bytes += bias_packed.size * bias_packed.dtype.itemsize
    noise_streams = 1 if generate_noise_in_kernel else 2
    io_bytes = 2 * batch_tile * (data_dim * 4 + noise_streams * z_dim * 4)
    widest = max([data_dim, z_dim, *out_dims])
    act_bytes = 2 * batch_tile * widest * 4
    vmem_cap = int(0.875 * _vmem_capacity_bytes())
    vmem_limit = min(vmem_cap,
                     max(min(32 << 20, vmem_cap),
                         2 * (wbufs * weight_bytes + io_bytes + act_bytes)))

    return pl.pallas_call(
        kernel,
        out_shape=jax.ShapeDtypeStruct((padded_batch, z_dim), out_dtype),
        grid_spec=pltpu.PrefetchScalarGridSpec(
            num_scalar_prefetch=0,
            grid=(padded_batch // batch_tile,),
            in_specs=in_specs,
            out_specs=out_spec,
        ),
        compiler_params=pltpu.CompilerParams(
            dimension_semantics=("parallel",),
            vmem_limit_bytes=int(vmem_limit),
        ),
    )


# ----------------------------------------------------------------------------
# Public wrapper.
# ----------------------------------------------------------------------------

def prepare_params(weights, biases, *, compute_dtype=jnp.bfloat16):
    """One-time parameter prep (do NOT call per forward step):
       * warms the hardware/capability caches eagerly (outside any jit trace),
       * casts weights to the MXU compute dtype once,
       * packs the L bias vectors into a single (L, max_out_dim) f32 array
         (one DMA descriptor instead of L, no per-bias (8,128) padding)."""
    _single_buffer_supported()
    _vmem_capacity_bytes()
    _num_tensorcores()

    weights_c = tuple(jnp.asarray(w, compute_dtype) for w in weights)
    max_out = max(int(w.shape[1]) for w in weights)
    rows = []
    for b in biases:
        b = jnp.asarray(b, jnp.float32).reshape(-1)
        rows.append(jnp.pad(b, (0, max_out - b.shape[0])))
    bias_packed = jnp.stack(rows, axis=0)
    return weights_c, bias_packed


@functools.partial(jax.jit,
                   static_argnames=("generate_noise_in_kernel", "negative_slope"))
def reconstructor_forward(x, weights, bias_packed, noise_or_seed, *,
                          generate_noise_in_kernel=False, negative_slope=0.2):
    """Runs the full MLP + noise addition inside a single Pallas kernel.

    x:             (B, data_dim)  f32 or bf16
    weights:       tuple of (in_dim, out_dim) arrays (bf16 from prepare_params)
    bias_packed:   (L, max_out_dim) f32 from prepare_params
    noise_or_seed: (B, z_dim) f32 noise (torch.randn term), or an int32 seed
                   when generate_noise_in_kernel=True.
    """
    batch, data_dim = x.shape
    z_dim = int(weights[-1].shape[1])
    compute_dtype = weights[0].dtype

    kind = _device_kind()
    # bf16 VALUs exist on v6e/v7x; v5e (and v4/v5p) keep f32 elementwise.
    use_bf16_ew = (("v6" in kind or "v7" in kind)
                   and weights[0].dtype == jnp.bfloat16)
    elementwise_dtype = jnp.bfloat16 if use_bf16_ew else jnp.float32

    tb, padded_batch = _pick_tiling(int(batch), _num_tensorcores())
    pad = padded_batch - batch

    x_p = jnp.pad(x, ((0, pad), (0, 0))) if pad else x
    if generate_noise_in_kernel:
        rng_arg = jnp.asarray(noise_or_seed, jnp.int32).reshape((1,))
    else:
        rng_arg = noise_or_seed
        if pad:
            rng_arg = jnp.pad(rng_arg, ((0, pad), (0, 0)))

    call = _build_call(padded_batch, tb, int(data_dim), z_dim, weights,
                       bias_packed, x.dtype,
                       generate_noise_in_kernel=generate_noise_in_kernel,
                       elementwise_dtype=elementwise_dtype,
                       compute_dtype=compute_dtype,
                       negative_slope=negative_slope)
    out = call(x_p, *weights, bias_packed, rng_arg)
    return out[:batch] if pad else out


# ----------------------------------------------------------------------------
# Reference + demo.
# ----------------------------------------------------------------------------

def init_params(key, data_dim, nrfs, z_dim):
    """Deterministic synthetic init mirroring weights_init: W ~ N(0, 0.02)."""
    dims = [data_dim] + list(nrfs) + [z_dim]
    weights, biases = [], []
    for i in range(len(dims) - 1):
        key, wk, bk = jax.random.split(key, 3)
        in_d, out_d = dims[i], dims[i + 1]
        w = 0.02 * jax.random.normal(wk, (in_d, out_d), dtype=jnp.float32)
        # PyTorch Linear default bias init: U(-1/sqrt(in), 1/sqrt(in))
        bound = 1.0 / (in_d ** 0.5)
        b = jax.random.uniform(bk, (1, out_d), minval=-bound, maxval=bound,
                               dtype=jnp.float32)
        weights.append(w)
        biases.append(b)
    return weights, biases


def reference_forward(x, weights, biases, noise, negative_slope=0.2):
    h = x
    for i, (w, b) in enumerate(zip(weights, biases)):
        h = h @ w + b
        if i < len(weights) - 1:
            h = jnp.where(h > 0, h, negative_slope * h)
    return noise + h


if __name__ == "__main__":
    # Small shapes consistent with the module: MLP over flat features.
    batch, data_dim, z_dim = 256, 16, 8
    nrfs = [32, 64]

    key = jax.random.PRNGKey(0)
    key, xk, nk, pk = jax.random.split(key, 4)

    x = jax.random.normal(xk, (batch, data_dim), dtype=jnp.float32)
    weights, biases = init_params(pk, data_dim, nrfs, z_dim)
    # torch.randn(mus.shape) equivalent, generated deterministically as glue.
    noise = jax.random.normal(nk, (batch, z_dim), dtype=jnp.float32)

    weights_c, bias_packed = prepare_params(weights, biases)

    out = reconstructor_forward(x, weights_c, bias_packed, noise)
    out = jax.block_until_ready(out)

    ref = reference_forward(x, weights, biases, noise)   # f32 reference
    assert out.shape == (batch, z_dim)
    # bf16 MXU operands / bf16 hidden elementwise with f32 accumulation and a
    # f32 final layer -> bf16-level tolerance vs the f32 reference.
    assert jnp.allclose(out, ref, atol=2e-2, rtol=2e-2), "mismatch vs JAX reference"

    # Also exercise an awkward (non-multiple-of-8) batch to validate the
    # wrapper-side padding path that replaced the old divisor search.
    x_odd, noise_odd = x[:100], noise[:100]
    out_odd = jax.block_until_ready(
        reconstructor_forward(x_odd, weights_c, bias_packed, noise_odd))
    ref_odd = reference_forward(x_odd, weights, biases, noise_odd)
    assert out_odd.shape == (100, z_dim)
    assert jnp.allclose(out_odd, ref_odd, atol=2e-2, rtol=2e-2), \
        "mismatch vs JAX reference (padded batch)"

    print("KERNEL_OK")
</pallas_src>

<mosaic_0001>
module attributes {stable_mosaic.version = 11 : i64} {
  func.func @probe_kernel(%arg0: i32, %arg1: memref<8x128xf32, #tpu.memory_space<vmem>>, %arg2: memref<8x128xf32, #tpu.memory_space<vmem>>, %arg3: memref<8x128xf32, #tpu.memory_space<vmem>>) attributes {dimension_semantics = [#tpu.dimension_semantics<arbitrary>], iteration_bounds = array<i64: 2>, scalar_prefetch = 0 : i64, scratch_operands = 0 : i64, tpu.core_type = #tpu.core_type<tc>, window_params = [{transform_indices = @transform_0, window_bounds = array<i64: 8, 128>}, {pipeline_mode = #tpu.pipeline_mode<synchronous>, transform_indices = @transform_1, window_bounds = array<i64: 8, 128>}, {transform_indices = @transform_2, window_bounds = array<i64: 8, 128>}]} {
    %c0 = arith.constant 0 : index
    %c0_0 = arith.constant 0 : index
    %0 = vector.load %arg1[%c0, %c0_0] : memref<8x128xf32, #tpu.memory_space<vmem>>, vector<8x128xf32>
    %c0_1 = arith.constant 0 : index
    %c0_2 = arith.constant 0 : index
    %1 = vector.load %arg2[%c0_1, %c0_2] : memref<8x128xf32, #tpu.memory_space<vmem>>, vector<8x128xf32>
    %2 = arith.addf %0, %1 : vector<8x128xf32>
    %c0_3 = arith.constant 0 : index
    %c0_4 = arith.constant 0 : index
    %3 = vector.load %arg3[%c0_3, %c0_4] : memref<8x128xf32, #tpu.memory_space<vmem>>, vector<8x128xf32>
    tpu.vector_store %arg3[%c0_3, %c0_4], %2 {strides = array<i32>} : memref<8x128xf32, #tpu.memory_space<vmem>>, vector<8x128xf32>,
    return
  }
  func.func @transform_0(%arg0: i32) -> (i32, i32) {
    %c0_i32 = arith.constant 0 : i32
    %c0_i32_0 = arith.constant 0 : i32
    return %arg0, %c0_i32 : i32, i32
  }
  func.func @transform_1(%arg0: i32) -> (i32, i32) {
    %c0_i32 = arith.constant 0 : i32
    %c0_i32_0 = arith.constant 0 : i32
    %c0_i32_1 = arith.constant 0 : i32
    return %c0_i32, %c0_i32_0 : i32, i32
  }
  func.func @transform_2(%arg0: i32) -> (i32, i32) {
    %c0_i32 = arith.constant 0 : i32
    %c0_i32_0 = arith.constant 0 : i32
    return %arg0, %c0_i32 : i32, i32
  }
}

module attributes {stable_mosaic.version = 11 : i64} {
  func.func @kernel(%arg0: i32, %arg1: memref<256x16xf32, #tpu.memory_space<vmem>>, %arg2: memref<16x32xbf16, #tpu.memory_space<vmem>>, %arg3: memref<32x64xbf16, #tpu.memory_space<vmem>>, %arg4: memref<64x8xbf16, #tpu.memory_space<vmem>>, %arg5: memref<3x64xf32, #tpu.memory_space<vmem>>, %arg6: memref<256x8xf32, #tpu.memory_space<vmem>>, %arg7: memref<256x8xf32, #tpu.memory_space<vmem>>) attributes {dimension_semantics = [#tpu.dimension_semantics<parallel>], iteration_bounds = array<i64: 1>, scalar_prefetch = 0 : i64, scratch_operands = 0 : i64, tpu.core_type = #tpu.core_type<tc>, window_params = [{transform_indices = @transform_0, window_bounds = array<i64: 256, 16>}, {pipeline_mode = #tpu.pipeline_mode<synchronous>, transform_indices = @transform_1, window_bounds = array<i64: 16, 32>}, {pipeline_mode = #tpu.pipeline_mode<synchronous>, transform_indices = @transform_2, window_bounds = array<i64: 32, 64>}, {pipeline_mode = #tpu.pipeline_mode<synchronous>, transform_indices = @transform_3, window_bounds = array<i64: 64, 8>}, {pipeline_mode = #tpu.pipeline_mode<synchronous>, transform_indices = @transform_4, window_bounds = array<i64: 3, 64>}, {transform_indices = @transform_5, window_bounds = array<i64: 256, 8>}, {transform_indices = @transform_6, window_bounds = array<i64: 256, 8>}]} {
    %c0 = arith.constant 0 : index
    %c0_0 = arith.constant 0 : index
    %0 = vector.load %arg1[%c0, %c0_0] : memref<256x16xf32, #tpu.memory_space<vmem>>, vector<256x16xf32>
    %1 = arith.truncf %0 : vector<256x16xf32> to vector<256x16xbf16>
    %c0_1 = arith.constant 0 : index
    %c0_2 = arith.constant 0 : index
    %2 = vector.load %arg2[%c0_1, %c0_2] : memref<16x32xbf16, #tpu.memory_space<vmem>>, vector<16x32xbf16>
    %cst = arith.constant dense<0.000000e+00> : vector<256x32xf32>
    %3 = tpu.matmul %1, %2, %cst {dimension_numbers = #tpu.dot_dimension_numbers<[1], [0], [0], [1], [0, 0, 1, 1], [], []>} : vector<256x16xbf16>, vector<16x32xbf16>, vector<256x32xf32> -> vector<256x32xf32>
    %c0_3 = arith.constant 0 : index
    %c0_4 = arith.constant 0 : index
    %4 = vector.load %arg5[%c0_3, %c0_4] : memref<3x64xf32, #tpu.memory_space<vmem>>, vector<1x32xf32>
    %5 = vector.broadcast %4 : vector<1x32xf32> to vector<256x32xf32>
    %6 = arith.addf %3, %5 : vector<256x32xf32>
    %cst_5 = arith.constant 0.000000e+00 : f32
    %7 = vector.broadcast %cst_5 : f32 to vector<256x32xf32>
    %8 = arith.cmpf ogt, %6, %7 : vector<256x32xf32>
    %cst_6 = arith.constant 2.000000e-01 : f32
    %9 = vector.broadcast %cst_6 : f32 to vector<256x32xf32>
    %10 = arith.mulf %9, %6 : vector<256x32xf32>
    %11 = arith.select %8, %6, %10 : vector<256x32xi1>, vector<256x32xf32>
    %12 = arith.truncf %11 : vector<256x32xf32> to vector<256x32xbf16>
    %c0_7 = arith.constant 0 : index
    %c0_8 = arith.constant 0 : index
    %13 = vector.load %arg3[%c0_7, %c0_8] : memref<32x64xbf16, #tpu.memory_space<vmem>>, vector<32x64xbf16>
    %cst_9 = arith.constant dense<0.000000e+00> : vector<256x64xf32>
    %14 = tpu.matmul %12, %13, %cst_9 {dimension_numbers = #tpu.dot_dimension_numbers<[1], [0], [0], [1], [0, 0, 1, 1], [], []>} : vector<256x32xbf16>, vector<32x64xbf16>, vector<256x64xf32> -> vector<256x64xf32>
    %c1 = arith.constant 1 : index
    %c0_10 = arith.constant 0 : index
    %15 = vector.load %arg5[%c1, %c0_10] : memref<3x64xf32, #tpu.memory_space<vmem>>, vector<1x64xf32>
    %16 = vector.broadcast %15 : vector<1x64xf32> to vector<256x64xf32>
    %17 = arith.addf %14, %16 : vector<256x64xf32>
    %cst_11 = arith.constant 0.000000e+00 : f32
    %18 = vector.broadcast %cst_11 : f32 to vector<256x64xf32>
    %19 = arith.cmpf ogt, %17, %18 : vector<256x64xf32>
    %cst_12 = arith.constant 2.000000e-01 : f32
    %20 = vector.broadcast %cst_12 : f32 to vector<256x64xf32>
    %21 = arith.mulf %20, %17 : vector<256x64xf32>
    %22 = arith.select %19, %17, %21 : vector<256x64xi1>, vector<256x64xf32>
    %23 = arith.truncf %22 : vector<256x64xf32> to vector<256x64xbf16>
    %c0_13 = arith.constant 0 : index
    %c0_14 = arith.constant 0 : index
    %24 = vector.load %arg4[%c0_13, %c0_14] : memref<64x8xbf16, #tpu.memory_space<vmem>>, vector<64x8xbf16>
    %cst_15 = arith.constant dense<0.000000e+00> : vector<256x8xf32>
    %25 = tpu.matmul %23, %24, %cst_15 {dimension_numbers = #tpu.dot_dimension_numbers<[1], [0], [0], [1], [0, 0, 1, 1], [], []>} : vector<256x64xbf16>, vector<64x8xbf16>, vector<256x8xf32> -> vector<256x8xf32>
    %c2 = arith.constant 2 : index
    %c0_16 = arith.constant 0 : index
    %26 = vector.load %arg5[%c2, %c0_16] : memref<3x64xf32, #tpu.memory_space<vmem>>, vector<1x8xf32>
    %27 = vector.broadcast %26 : vector<1x8xf32> to vector<256x8xf32>
    %28 = arith.addf %25, %27 : vector<256x8xf32>
    %c0_17 = arith.constant 0 : index
    %c0_18 = arith.constant 0 : index
    %29 = vector.load %arg6[%c0_17, %c0_18] : memref<256x8xf32, #tpu.memory_space<vmem>>, vector<256x8xf32>
    %30 = arith.addf %29, %28 : vector<256x8xf32>
    %c0_19 = arith.constant 0 : index
    %c0_20 = arith.constant 0 : index
    %31 = vector.load %arg7[%c0_19, %c0_20] : memref<256x8xf32, #tpu.memory_space<vmem>>, vector<256x8xf32>
    tpu.vector_store %arg7[%c0_19, %c0_20], %30 {strides = array<i32>} : memref<256x8xf32, #tpu.memory_space<vmem>>, vector<256x8xf32>,
    return
  }
  func.func @transform_0(%arg0: i32) -> (i32, i32) {
    %c0_i32 = arith.constant 0 : i32
    %c0_i32_0 = arith.constant 0 : i32
    return %arg0, %c0_i32 : i32, i32
  }
  func.func @transform_1(%arg0: i32) -> (i32, i32) {
    %c0_i32 = arith.constant 0 : i32
    %c0_i32_0 = arith.constant 0 : i32
    %c0_i32_1 = arith.constant 0 : i32
    return %c0_i32, %c0_i32_0 : i32, i32
  }
  func.func @transform_2(%arg0: i32) -> (i32, i32) {
    %c0_i32 = arith.constant 0 : i32
    %c0_i32_0 = arith.constant 0 : i32
    %c0_i32_1 = arith.constant 0 : i32
    return %c0_i32, %c0_i32_0 : i32, i32
  }
  func.func @transform_3(%arg0: i32) -> (i32, i32) {
    %c0_i32 = arith.constant 0 : i32
    %c0_i32_0 = arith.constant 0 : i32
    %c0_i32_1 = arith.constant 0 : i32
    return %c0_i32, %c0_i32_0 : i32, i32
  }
  func.func @transform_4(%arg0: i32) -> (i32, i32) {
    %c0_i32 = arith.constant 0 : i32
    %c0_i32_0 = arith.constant 0 : i32
    %c0_i32_1 = arith.constant 0 : i32
    return %c0_i32, %c0_i32_0 : i32, i32
  }
  func.func @transform_5(%arg0: i32) -> (i32, i32) {
    %c0_i32 = arith.constant 0 : i32
    %c0_i32_0 = arith.constant 0 : i32
    return %arg0, %c0_i32 : i32, i32
  }
  func.func @transform_6(%arg0: i32) -> (i32, i32) {
    %c0_i32 = arith.constant 0 : i32
    %c0_i32_0 = arith.constant 0 : i32
    return %arg0, %c0_i32 : i32, i32
  }
}

</mosaic_0001>

<llo_original>
// kernel: tpu_custom_call.1
$region0: #{tpu_custom_call.1}
  #allocation0 [shape = 'u32[]', space=smem, size = 0x4, offset = 0x4, fixed_abs, tag = 'smem constant byte address 0x4 - core index']
  #allocation1 [shape = 'u32[144,128]{1,0:T(1,128)}', space=vmem, size = 0x12000, scoped, tag = 'internal scratch']
  %s0 = inlined_call_operand.hbm [shape: f32[16,128], index: 0, kind: input, shape index: {}]
  %s1 = inlined_call_operand.hbm [shape: f32[8,128], index: 1, kind: input, shape index: {}]
  %s2 = inlined_call_operand.hbm [shape: f32[16,128], index: 2, kind: output, shape index: {}]
  %s3 = sld [smem:[#allocation0]]
  $region49: #{tpu_custom_call.1} parent=0
    _
  %s5 = ssub.s32 1, %s3
  %s6 = scalar_select 0, %s5, %s3
  $region1: #{tpu_custom_call.1} parent=0
    #allocation2 [shape = 'u8[8192]{0}', space=vmem, size = 0x2000, scoped, tag = 'input window, operand 0']
    #allocation3 [shape = 's32[2]{0}', space=sflag, size = 0x8, scoped, tag = 'scoped memory for tpu_custom_call.1']
    #allocation4 [shape = 's32[2]{0}', space=sflag, size = 0x8, scoped, tag = 'scoped memory for tpu_custom_call.1']
    #allocation5 [shape = 'u8[4096]{0}', space=vmem, size = 0x1000, scoped, tag = 'input window, operand 1, single buffered']
    #allocation6 [shape = 's32[1]{0}', space=sflag, size = 0x4, scoped, tag = 'scoped memory for tpu_custom_call.1']
    #allocation7 [shape = 'u8[8192]{0}', space=vmem, size = 0x2000, scoped, tag = 'output window, operand 0']
    %7 = vsyncpa [#allocation3], 0
    %s8 = scalar_lea.sflag [#allocation3], 1
    %9 = vsyncpa %s8, 0
    %10 = vsyncpa [#allocation6], 0
    %11 = vsyncpa [#allocation4], 0
    %s12 = scalar_lea.sflag [#allocation4], 1
    %13 = vsyncpa %s12, 0
    loop: start=0, step=1, limit=4
    $region2: #{tpu_custom_call.1} parent=1 // loop_pre_header
      _
    $region3: #{tpu_custom_call.1} parent=1 // loop_header
      %s15 = sphi 0, %s19
      %p16 = scmp.ge.s32.totalorder %s15, 4
      %s25 = sphi 0, %s27
      %s28 = sphi 0, %s25
      %s29 = sphi 0, %s28
      %s45 = sphi 0, %s29
      %s49 = sphi 0, %s49
      %s51 = sphi 0, %s49
      %s52 = sphi 0, %s51
      %s66 = sphi 0, %s52
      %s72 = sphi 0, %s74
      %s75 = sphi 0, %s72
      %s76 = sphi 0, %s75
      %s92 = sphi 0, %s76
    $region4: #{tpu_custom_call.1} parent=1 // loop_header_branch
      %18 = sbr.rel (%p16) target = $region8
    $region5: #{tpu_custom_call.1} parent=1 // loop_body
      %s20 = ssub.s32 %s15, 1
      %s21 = ssub.s32 %s15, 2
      %s22 = sadd.s32 %s15, 1
      %s23 = ssub.s32 %s15, %s22
      %p24 = scmp.eq.s32.totalorder %s23, 0
      %s26 = sadd.s32 %s25, 1
      %s27 = scalar_select %p24, %s25, %s26
      %p30 = pneg %p24
      %p31 = scmp.eq.s32.totalorder %s15, 1
      %p32 = por %p30, %p31
      %p33 = scmp.ne.s32.totalorder %s25, %s28
      %p34 = scmp.eq.s32.totalorder %s15, 0
      %p35 = por %p33, %p34
      %p36 = scmp.ne.s32.totalorder %s25, %s28
      %p37 = scmp.eq.s32.totalorder %s20, 1
      %p38 = por %p36, %p37
      %p39 = scmp.ne.s32.totalorder %s28, %s29
      %p40 = scmp.eq.s32.totalorder %s20, 0
      %p41 = por %p39, %p40
      %p42 = scmp.ne.s32.totalorder %s28, %s29
      %p43 = scmp.eq.s32.totalorder %s21, 1
      %p44 = por %p42, %p43
      %p46 = scmp.ne.s32.totalorder %s29, %s45
      %p47 = scmp.eq.s32.totalorder %s21, 0
      %p48 = por %p46, %p47
      %s50 = sadd.s32 %s49, 1
      %p53 = scmp.eq.s32.totalorder %s15, 1
      %p54 = scmp.ne.s32.totalorder %s49, %s51
      %p55 = scmp.eq.s32.totalorder %s15, 0
      %p56 = por %p54, %p55
      %p57 = scmp.ne.s32.totalorder %s49, %s51
      %p58 = scmp.eq.s32.totalorder %s20, 1
      %p59 = por %p57, %p58
      %p60 = scmp.ne.s32.totalorder %s51, %s52
      %p61 = scmp.eq.s32.totalorder %s20, 0
      %p62 = por %p60, %p61
      %p63 = scmp.ne.s32.totalorder %s51, %s52
      %p64 = scmp.eq.s32.totalorder %s21, 1
      %p65 = por %p63, %p64
      %p67 = scmp.ne.s32.totalorder %s52, %s66
      %p68 = scmp.eq.s32.totalorder %s21, 0
      %p69 = por %p67, %p68
      %s70 = ssub.s32 %s15, %s22
      %p71 = scmp.eq.s32.totalorder %s70, 0
      %s73 = sadd.s32 %s72, 1
      %s74 = scalar_select %p71, %s72, %s73
      %p77 = pneg %p71
      %p78 = scmp.eq.s32.totalorder %s15, 1
      %p79 = por %p77, %p78
      %p80 = scmp.ne.s32.totalorder %s72, %s75
      %p81 = scmp.eq.s32.totalorder %s15, 0
      %p82 = por %p80, %p81
      %p83 = scmp.ne.s32.totalorder %s72, %s75
      %p84 = scmp.eq.s32.totalorder %s20, 1
      %p85 = por %p83, %p84
      %p86 = scmp.ne.s32.totalorder %s75, %s76
      %p87 = scmp.eq.s32.totalorder %s20, 0
      %p88 = por %p86, %p87
      %p89 = scmp.ne.s32.totalorder %s75, %s76
      %p90 = scmp.eq.s32.totalorder %s21, 1
      %p91 = por %p89, %p90
      %p93 = scmp.ne.s32.totalorder %s76, %s92
      %p94 = scmp.eq.s32.totalorder %s21, 0
      %p95 = por %p93, %p94
      %p96 = scmp.le.s32.totalorder 1, %s15
      %p97 = scmp.lt.s32.totalorder %s15, 3
      %p98 = pnand %p96, %p97
      %p99 = pneg %p98
      // Predicated region
      $region9: #{tpu_custom_call.1} parent=5 // pred_check
        _
      $region10: #{tpu_custom_call.1} parent=5 // pred_check_branch
        %101 = sbr.rel (%p98) target = $region12
      $region11: #{tpu_custom_call.1} parent=5 // pred_region
        %s102 = ssub.s32 %s15, 1
        // Predicated region
        $region13: #{tpu_custom_call.1} parent=11 // pred_check
          %p103 = pneg %p62
        $region14: #{tpu_custom_call.1} parent=11 // pred_check_branch
          %105 = sbr.rel (%p103) target = $region16
        $region15: #{tpu_custom_call.1} parent=11 // pred_region
          %s107 = ssub.s32 128, 128
          %108 = vsyncadd [#allocation6], %s107
          %s110 = sshll.u32 [#allocation5], 4
          %s111 = int_to_ptr.vmem [resolvable:$true] %s110
          %113 = dma.hbm_to_vmem [thread:$0]  %s1, 128, %s111, [#allocation6]
        $region16: #{tpu_custom_call.1} parent=11 // pred_fallthru
          _
      $region12: #{tpu_custom_call.1} parent=5 // pred_fallthru
        _
      %p114 = scmp.lt.s32.totalorder %s15, 2
      // Predicated region
      $region17: #{tpu_custom_call.1} parent=5 // pred_check
        %p115 = pneg %p114
      $region18: #{tpu_custom_call.1} parent=5 // pred_check_branch
        %117 = sbr.rel (%p115) target = $region20
      $region19: #{tpu_custom_call.1} parent=5 // pred_region
        // Predicated region
        $region21: #{tpu_custom_call.1} parent=19 // pred_check
          %p118 = pneg %p35
        $region22: #{tpu_custom_call.1} parent=19 // pred_check_branch
          %120 = sbr.rel (%p118) target = $region24
        $region23: #{tpu_custom_call.1} parent=19 // pred_region
          %s121 = sand.u32 %s25, 1
          %s122 = scalar_lea.sflag [#allocation3], %s121
          %s123 = sand.u32 %s25, 1
          %s124 = smul.addr %s123, 8
          %s125 = scalar_lea.vmem [#allocation2], %s124
          %s127 = ssub.s32 128, 128
          %128 = vsyncadd %s122, %s127
          %s129 = smul.addr %s15, 128
          %s130 = scalar_lea.hbm %s0, %s129
          %s132 = sshll.u32 %s125, 4
          %s133 = int_to_ptr.vmem [resolvable:$true] %s132
          %135 = dma.hbm_to_vmem [thread:$0]  %s130, 128, %s133, %s122
        $region24: #{tpu_custom_call.1} parent=19 // pred_fallthru
          _
      $region20: #{tpu_custom_call.1} parent=5 // pred_fallthru
        _
      %p136 = scmp.le.s32.totalorder 1, %s15
      %p137 = scmp.lt.s32.totalorder %s15, 3
      %p138 = pnand %p136, %p137
      %p139 = pneg %p138
      // Predicated region
      $region25: #{tpu_custom_call.1} parent=5 // pred_check
        _
      $region26: #{tpu_custom_call.1} parent=5 // pred_check_branch
        %141 = sbr.rel (%p138) target = $region28
      $region27: #{tpu_custom_call.1} parent=5 // pred_region
        %s142 = ssub.s32 %s15, 1
        %s143 = sand.u32 %s28, 1
        %s144 = scalar_lea.sflag [#allocation3], %s143
        %s145 = sand.u32 %s28, 1
        %s146 = smul.addr %s145, 8
        %s147 = scalar_lea.vmem [#allocation2], %s146
        // Predicated region
        $region29: #{tpu_custom_call.1} parent=27 // pred_check
          %p148 = pneg %p41
        $region30: #{tpu_custom_call.1} parent=27 // pred_check_branch
          %150 = sbr.rel (%p148) target = $region32
        $region31: #{tpu_custom_call.1} parent=27 // pred_region
          %151 = dma.done %s144, 128
        $region32: #{tpu_custom_call.1} parent=27 // pred_fallthru
          _
        // Predicated region
        $region33: #{tpu_custom_call.1} parent=27 // pred_check
          %p152 = pneg %p62
        $region34: #{tpu_custom_call.1} parent=27 // pred_check_branch
          %154 = sbr.rel (%p152) target = $region36
        $region35: #{tpu_custom_call.1} parent=27 // pred_region
          %155 = dma.done [#allocation6], 128
        $region36: #{tpu_custom_call.1} parent=27 // pred_fallthru
          _
        %s156 = sand.u32 %s28, 1
        %s157 = scalar_lea.sflag [#allocation3], %s156
        %s158 = sand.u32 %s28, 1
        %s159 = smul.addr %s158, 8
        %s160 = scalar_lea.vmem [#allocation2], %s159
        %p161 = pneg %p41
        %p162 = pneg %p38
        %p163 = pneg %p62
        %p164 = pneg %p59
        %p165 = pneg %p88
        %p166 = pneg %p85
        %s167 = sand.u32 %s75, 1
        %s168 = scalar_lea.sflag [#allocation4], %s167
        %s169 = sand.u32 %s75, 1
        %s170 = smul.addr %s169, 8
        %s171 = scalar_lea.vmem [#allocation7], %s170
        %v172 = vld [vmem:[%s147] sm:$0xff]
        %v173 = vld [vmem:[#allocation5] sm:$0xff]
        %v174 = vadd.f32 %v172, %v173
        %175 = vst [vmem:[%s171] sm:$0xff] %v174
        %s176 = sand.u32 %s75, 1
        %s177 = scalar_lea.sflag [#allocation4], %s176
        %s178 = sand.u32 %s75, 1
        %s179 = smul.addr %s178, 8
        %s180 = scalar_lea.vmem [#allocation7], %s179
        // Predicated region
        $region37: #{tpu_custom_call.1} parent=27 // pred_check
          %p181 = pneg %p85
        $region38: #{tpu_custom_call.1} parent=27 // pred_check_branch
          %183 = sbr.rel (%p181) target = $region40
        $region39: #{tpu_custom_call.1} parent=27 // pred_region
          %s185 = ssub.s32 128, 128
          %186 = vsyncadd %s177, %s185
          %s187 = smul.addr %s20, 128
          %s188 = scalar_lea.hbm %s2, %s187
          %s190 = sshll.u32 %s180, 4
          %s191 = int_to_ptr.vmem [resolvable:$true] %s190
          %193 = dma.vmem_to_hbm [thread:$0]  %s191, 128, %s188, %s177
        $region40: #{tpu_custom_call.1} parent=27 // pred_fallthru
          _
      $region28: #{tpu_custom_call.1} parent=5 // pred_fallthru
        _
      %p194 = scmp.le.s32.totalorder 2, %s15
      // Predicated region
      $region41: #{tpu_custom_call.1} parent=5 // pred_check
        %p195 = pneg %p194
      $region42: #{tpu_custom_call.1} parent=5 // pred_check_branch
        %197 = sbr.rel (%p195) target = $region44
      $region43: #{tpu_custom_call.1} parent=5 // pred_region
        %s198 = ssub.s32 %s15, 2
        // Predicated region
        $region45: #{tpu_custom_call.1} parent=43 // pred_check
          %p199 = pneg %p91
        $region46: #{tpu_custom_call.1} parent=43 // pred_check_branch
          %201 = sbr.rel (%p199) target = $region48
        $region47: #{tpu_custom_call.1} parent=43 // pred_region
          %s202 = sand.u32 %s76, 1
          %s203 = scalar_lea.sflag [#allocation4], %s202
          %s204 = sand.u32 %s76, 1
          %s205 = smul.addr %s204, 8
          %s206 = scalar_lea.vmem [#allocation7], %s205
          %207 = dma.done %s203, 128
        $region48: #{tpu_custom_call.1} parent=43 // pred_fallthru
          _
      $region44: #{tpu_custom_call.1} parent=5 // pred_fallthru
        _
    $region6: #{tpu_custom_call.1} parent=1 // loop_footer
      %s19 = sadd.s32 1, %s15
    $region7: #{tpu_custom_call.1} parent=1 // loop_footer_branch
      %14 = sbr.rel target = $region3
    $region8: #{tpu_custom_call.1} parent=1 // loop_exit
      _
    %208 = vsyncpa [#allocation3], 1
    %s209 = scalar_lea.sflag [#allocation3], 1
    %210 = vsyncpa %s209, 1
    %211 = vsyncpa [#allocation6], 1
    %212 = vsyncpa [#allocation4], 1
    %s213 = scalar_lea.sflag [#allocation4], 1
    %214 = vsyncpa %s213, 1

// kernel: reconstructor_forward.1
$region0: #{reconstructor_forward.1}
  #allocation0 [shape = 'u32[]', space=smem, size = 0x4, offset = 0x4, fixed_abs, tag = 'smem constant byte address 0x4 - core index']
  #allocation1 [shape = 'u32[144,128]{1,0:T(1,128)}', space=vmem, size = 0x12000, scoped, tag = 'internal scratch']
  %s0 = inlined_call_operand.vmem [shape: f32[256,16], index: 0, kind: input, shape index: {}]
  %s1 = inlined_call_operand.vmem [shape: bf16[16,32], index: 1, kind: input, shape index: {}]
  %s2 = inlined_call_operand.vmem [shape: bf16[32,64], index: 2, kind: input, shape index: {}]
  %s3 = inlined_call_operand.vmem [shape: bf16[64,8], index: 3, kind: input, shape index: {}]
  %s4 = inlined_call_operand.vmem [shape: f32[3,64], index: 4, kind: input, shape index: {}]
  %s5 = inlined_call_operand.vmem [shape: f32[256,8], index: 5, kind: input, shape index: {}]
  %s6 = inlined_call_operand.vmem [shape: f32[256,8], index: 6, kind: output, shape index: {}]
  %s7 = sld [smem:[#allocation0]]
  $region34: #{reconstructor_forward.1} parent=0
    _
  %s9 = ssub.s32 1, %s7
  %s10 = scalar_select 0, %s9, %s7
  // Predicated region
  $region2: #{reconstructor_forward.1} parent=0 // pred_check
    _
  $region3: #{reconstructor_forward.1} parent=0 // pred_check_branch
    %12 = sbr.rel (0) target = $region5
  $region4: #{reconstructor_forward.1} parent=0 // pred_region
    _
  $region5: #{reconstructor_forward.1} parent=0 // pred_fallthru
    _
  // Predicated region
  $region6: #{reconstructor_forward.1} parent=0 // pred_check
    _
  $region7: #{reconstructor_forward.1} parent=0 // pred_check_branch
    %14 = sbr.rel (0) target = $region9
  $region8: #{reconstructor_forward.1} parent=0 // pred_region
    _
  $region9: #{reconstructor_forward.1} parent=0 // pred_fallthru
    _
  // Predicated region
  $region10: #{reconstructor_forward.1} parent=0 // pred_check
    _
  $region11: #{reconstructor_forward.1} parent=0 // pred_check_branch
    %16 = sbr.rel (0) target = $region13
  $region12: #{reconstructor_forward.1} parent=0 // pred_region
    _
  $region13: #{reconstructor_forward.1} parent=0 // pred_fallthru
    _
  // Predicated region
  $region14: #{reconstructor_forward.1} parent=0 // pred_check
    _
  $region15: #{reconstructor_forward.1} parent=0 // pred_check_branch
    %18 = sbr.rel (0) target = $region17
  $region16: #{reconstructor_forward.1} parent=0 // pred_region
    _
  $region17: #{reconstructor_forward.1} parent=0 // pred_fallthru
    _
  // Predicated region
  $region18: #{reconstructor_forward.1} parent=0 // pred_check
    _
  $region19: #{reconstructor_forward.1} parent=0 // pred_check_branch
    %20 = sbr.rel (0) target = $region21
  $region20: #{reconstructor_forward.1} parent=0 // pred_region
    _
  $region21: #{reconstructor_forward.1} parent=0 // pred_fallthru
    _
  // Predicated region
  $region22: #{reconstructor_forward.1} parent=0 // pred_check
    _
  $region23: #{reconstructor_forward.1} parent=0 // pred_check_branch
    %22 = sbr.rel (0) target = $region25
  $region24: #{reconstructor_forward.1} parent=0 // pred_region
    _
  $region25: #{reconstructor_forward.1} parent=0 // pred_fallthru
    _
  %v24 = vld [vmem:[%s0] sm:$0xff]
  %v25 = vld [vmem:[%s0 + $0x8] sm:$0xff]
  %v26 = vld [vmem:[%s0 + $0x10] sm:$0xff]
  %v27 = vld [vmem:[%s0 + $0x18] sm:$0xff]
  %v28 = vld [vmem:[%s0 + $0x20] sm:$0xff]
  %v29 = vld [vmem:[%s0 + $0x28] sm:$0xff]
  %v30 = vld [vmem:[%s0 + $0x30] sm:$0xff]
  %v31 = vld [vmem:[%s0 + $0x38] sm:$0xff]
  %v32 = vld [vmem:[%s0 + $0x40] sm:$0xff]
  %v33 = vld [vmem:[%s0 + $0x48] sm:$0xff]
  %v34 = vld [vmem:[%s0 + $0x50] sm:$0xff]
  %v35 = vld [vmem:[%s0 + $0x58] sm:$0xff]
  %v36 = vld [vmem:[%s0 + $0x60] sm:$0xff]
  %v37 = vld [vmem:[%s0 + $0x68] sm:$0xff]
  %v38 = vld [vmem:[%s0 + $0x70] sm:$0xff]
  %v39 = vld [vmem:[%s0 + $0x78] sm:$0xff]
  %v40 = vld [vmem:[%s0 + $0x80] sm:$0xff]
  %v41 = vld [vmem:[%s0 + $0x88] sm:$0xff]
  %v42 = vld [vmem:[%s0 + $0x90] sm:$0xff]
  %v43 = vld [vmem:[%s0 + $0x98] sm:$0xff]
  %v44 = vld [vmem:[%s0 + $0xa0] sm:$0xff]
  %v45 = vld [vmem:[%s0 + $0xa8] sm:$0xff]
  %v46 = vld [vmem:[%s0 + $0xb0] sm:$0xff]
  %v47 = vld [vmem:[%s0 + $0xb8] sm:$0xff]
  %v48 = vld [vmem:[%s0 + $0xc0] sm:$0xff]
  %v49 = vld [vmem:[%s0 + $0xc8] sm:$0xff]
  %v50 = vld [vmem:[%s0 + $0xd0] sm:$0xff]
  %v51 = vld [vmem:[%s0 + $0xd8] sm:$0xff]
  %v52 = vld [vmem:[%s0 + $0xe0] sm:$0xff]
  %v53 = vld [vmem:[%s0 + $0xe8] sm:$0xff]
  %v54 = vld [vmem:[%s0 + $0xf0] sm:$0xff]
  %v55 = vld [vmem:[%s0 + $0xf8] sm:$0xff]
  %v56 = vpack.c.bf16 %v25, %v24
  %v57 = vpack.c.bf16 %v27, %v26
  %v58 = vpack.c.bf16 %v29, %v28
  %v59 = vpack.c.bf16 %v31, %v30
  %v60 = vpack.c.bf16 %v33, %v32
  %v61 = vpack.c.bf16 %v35, %v34
  %v62 = vpack.c.bf16 %v37, %v36
  %v63 = vpack.c.bf16 %v39, %v38
  %v64 = vpack.c.bf16 %v41, %v40
  %v65 = vpack.c.bf16 %v43, %v42
  %v66 = vpack.c.bf16 %v45, %v44
  %v67 = vpack.c.bf16 %v47, %v46
  %v68 = vpack.c.bf16 %v49, %v48
  %v69 = vpack.c.bf16 %v51, %v50
  %v70 = vpack.c.bf16 %v53, %v52
  %v71 = vpack.c.bf16 %v55, %v54
  %v72 = vld [vmem:[%s1] sm:$0xf]
  %v73 = vld [vmem:[%s1 + $0x4] sm:$0xf]
  %v74 = vld [vmem:[%s4] sm:$0x1]
  %v75 = vlaneseq
  %v76 = vshrl.u32 %v75, 7
  %v77 = vsub.s32 0, %v76
  %v78 = vrot.slane %v74, %v77
  %v81 = vunpack.c.l.b16 %v72
  %v82 = vunpack.c.l.b16 %v73
  %v83 = vpack.c.b16 %v82, %v81
  %vm85 = vcmask 130048
  %v87 = vsel %vm85, %v56, 0
  %v90 = vsel %vm85, %v57, 0
  %v93 = vsel %vm85, %v58, 0
  %v96 = vsel %vm85, %v59, 0
  %v99 = vsel %vm85, %v60, 0
  %v102 = vsel %vm85, %v61, 0
  %v105 = vsel %vm85, %v62, 0
  %v108 = vsel %vm85, %v63, 0
  %v111 = vsel %vm85, %v64, 0
  %v114 = vsel %vm85, %v65, 0
  %v117 = vsel %vm85, %v66, 0
  %v120 = vsel %vm85, %v67, 0
  %v123 = vsel %vm85, %v68, 0
  %v126 = vsel %vm85, %v69, 0
  %v129 = vsel %vm85, %v70, 0
  %v132 = vsel %vm85, %v71, 0
  %134 = vmatprep.subr.bf16.mxu0 0
  %135 = vmatpush1.bf16.msra.mxu0 %v83
  %136 = vmatprep.subr.bf16.mxu0 0
  %137 = vmatpush1.bf16.msra.mxu0 0
  %138 = vmatprep.subr.bf16.mxu0 0
  %139 = vmatpush1.bf16.msra.mxu0 0
  %140 = vmatprep.subr.bf16.mxu0 0
  %141 = vmatpush1.bf16.msra.mxu0 0
  %142 = vmatprep.subr.bf16.mxu0 0
  %143 = vmatpush1.bf16.msra.mxu0 0
  %144 = vmatprep.subr.bf16.mxu0 0
  %145 = vmatpush1.bf16.msra.mxu0 0
  %146 = vmatprep.subr.bf16.mxu0 0
  %147 = vmatpush1.bf16.msra.mxu0 0
  %148 = vmatprep.subr.bf16.mxu0 0
  %149 = vmatpush1.bf16.msra.mxu0 0
  %150 = vmatprep.subr.bf16.mxu0 0
  %151 = vmatpush1.bf16.msra.mxu0 0
  %152 = vmatprep.subr.bf16.mxu0 0
  %153 = vmatpush1.bf16.msra.mxu0 0
  %154 = vmatprep.subr.bf16.mxu0 0
  %155 = vmatpush1.bf16.msra.mxu0 0
  %156 = vmatprep.subr.bf16.mxu0 0
  %157 = vmatpush1.bf16.msra.mxu0 0
  %158 = vmatprep.subr.bf16.mxu0 0
  %159 = vmatpush1.bf16.msra.mxu0 0
  %160 = vmatprep.subr.bf16.mxu0 0
  %161 = vmatpush1.bf16.msra.mxu0 0
  %162 = vmatprep.subr.bf16.mxu0 0
  %163 = vmatpush1.bf16.msra.mxu0 0
  %164 = vmatprep.subr.bf16.mxu0 0
  %165 = vmatpush1.bf16.msra.mxu0 0
  %166 = vmatprep.mubr.bf16.mxu0 0
  %167 = vmatmul.mubr.bf16.gmra.mrb[0].mxu0 %v87
  %v168 = vpop.f32.mrb[0].mxu0
  %v169 = vadd.f32 %v78, %v168
  %v170 = vpop.f32.mrb[0].mxu0
  %v171 = vpop.f32.mrb[0].mxu0
  %v172 = vadd.f32 %v78, %v171
  %v173 = vpop.f32.mrb[0].mxu0
  %174 = vmatprep.mubr.bf16.mxu0 0
  %175 = vmatmul.mubr.bf16.gmra.mrb[0].mxu0 %v90
  %v176 = vpop.f32.mrb[0].mxu0
  %v177 = vadd.f32 %v78, %v176
  %v178 = vpop.f32.mrb[0].mxu0
  %v179 = vpop.f32.mrb[0].mxu0
  %v180 = vadd.f32 %v78, %v179
  %v181 = vpop.f32.mrb[0].mxu0
  %182 = vmatprep.mubr.bf16.mxu0 0
  %183 = vmatmul.mubr.bf16.gmra.mrb[0].mxu0 %v93
  %v184 = vpop.f32.mrb[0].mxu0
  %v185 = vadd.f32 %v78, %v184
  %v186 = vpop.f32.mrb[0].mxu0
  %v187 = vpop.f32.mrb[0].mxu0
  %v188 = vadd.f32 %v78, %v187
  %v189 = vpop.f32.mrb[0].mxu0
  %190 = vmatprep.mubr.bf16.mxu0 0
  %191 = vmatmul.mubr.bf16.gmra.mrb[0].mxu0 %v96
  %v192 = vpop.f32.mrb[0].mxu0
  %v193 = vadd.f32 %v78, %v192
  %v194 = vpop.f32.mrb[0].mxu0
  %v195 = vpop.f32.mrb[0].mxu0
  %v196 = vadd.f32 %v78, %v195
  %v197 = vpop.f32.mrb[0].mxu0
  %198 = vmatprep.mubr.bf16.mxu0 0
  %199 = vmatmul.mubr.bf16.gmra.mrb[0].mxu0 %v99
  %v200 = vpop.f32.mrb[0].mxu0
  %v201 = vadd.f32 %v78, %v200
  %v202 = vpop.f32.mrb[0].mxu0
  %v203 = vpop.f32.mrb[0].mxu0
  %v204 = vadd.f32 %v78, %v203
  %v205 = vpop.f32.mrb[0].mxu0
  %206 = vmatprep.mubr.bf16.mxu0 0
  %207 = vmatmul.mubr.bf16.gmra.mrb[0].mxu0 %v102
  %v208 = vpop.f32.mrb[0].mxu0
  %v209 = vadd.f32 %v78, %v208
  %v210 = vpop.f32.mrb[0].mxu0
  %v211 = vpop.f32.mrb[0].mxu0
  %v212 = vadd.f32 %v78, %v211
  %v213 = vpop.f32.mrb[0].mxu0
  %214 = vmatprep.mubr.bf16.mxu0 0
  %215 = vmatmul.mubr.bf16.gmra.mrb[0].mxu0 %v105
  %v216 = vpop.f32.mrb[0].mxu0
  %v217 = vadd.f32 %v78, %v216
  %v218 = vpop.f32.mrb[0].mxu0
  %v219 = vpop.f32.mrb[0].mxu0
  %v220 = vadd.f32 %v78, %v219
  %v221 = vpop.f32.mrb[0].mxu0
  %222 = vmatprep.mubr.bf16.mxu0 0
  %223 = vmatmul.mubr.bf16.gmra.mrb[0].mxu0 %v108
  %v224 = vpop.f32.mrb[0].mxu0
  %v225 = vadd.f32 %v78, %v224
  %v226 = vpop.f32.mrb[0].mxu0
  %v227 = vpop.f32.mrb[0].mxu0
  %v228 = vadd.f32 %v78, %v227
  %v229 = vpop.f32.mrb[0].mxu0
  %230 = vmatprep.mubr.bf16.mxu0 0
  %231 = vmatmul.mubr.bf16.gmra.mrb[0].mxu0 %v111
  %v232 = vpop.f32.mrb[0].mxu0
  %v233 = vadd.f32 %v78, %v232
  %v234 = vpop.f32.mrb[0].mxu0
  %v235 = vpop.f32.mrb[0].mxu0
  %v236 = vadd.f32 %v78, %v235
  %v237 = vpop.f32.mrb[0].mxu0
  %238 = vmatprep.mubr.bf16.mxu0 0
  %239 = vmatmul.mubr.bf16.gmra.mrb[0].mxu0 %v114
  %v240 = vpop.f32.mrb[0].mxu0
  %v241 = vadd.f32 %v78, %v240
  %v242 = vpop.f32.mrb[0].mxu0
  %v243 = vpop.f32.mrb[0].mxu0
  %v244 = vadd.f32 %v78, %v243
  %v245 = vpop.f32.mrb[0].mxu0
  %246 = vmatprep.mubr.bf16.mxu0 0
  %247 = vmatmul.mubr.bf16.gmra.mrb[0].mxu0 %v117
  %v248 = vpop.f32.mrb[0].mxu0
  %v249 = vadd.f32 %v78, %v248
  %v250 = vpop.f32.mrb[0].mxu0
  %v251 = vpop.f32.mrb[0].mxu0
  %v252 = vadd.f32 %v78, %v251
  %v253 = vpop.f32.mrb[0].mxu0
  %254 = vmatprep.mubr.bf16.mxu0 0
  %255 = vmatmul.mubr.bf16.gmra.mrb[0].mxu0 %v120
  %v256 = vpop.f32.mrb[0].mxu0
  %v257 = vadd.f32 %v78, %v256
  %v258 = vpop.f32.mrb[0].mxu0
  %v259 = vpop.f32.mrb[0].mxu0
  %v260 = vadd.f32 %v78, %v259
  %v261 = vpop.f32.mrb[0].mxu0
  %262 = vmatprep.mubr.bf16.mxu0 0
  %263 = vmatmul.mubr.bf16.gmra.mrb[0].mxu0 %v123
  %v264 = vpop.f32.mrb[0].mxu0
  %v265 = vadd.f32 %v78, %v264
  %v266 = vpop.f32.mrb[0].mxu0
  %v267 = vpop.f32.mrb[0].mxu0
  %v268 = vadd.f32 %v78, %v267
  %v269 = vpop.f32.mrb[0].mxu0
  %270 = vmatprep.mubr.bf16.mxu0 0
  %271 = vmatmul.mubr.bf16.gmra.mrb[0].mxu0 %v126
  %v272 = vpop.f32.mrb[0].mxu0
  %v273 = vadd.f32 %v78, %v272
  %v274 = vpop.f32.mrb[0].mxu0
  %v275 = vpop.f32.mrb[0].mxu0
  %v276 = vadd.f32 %v78, %v275
  %v277 = vpop.f32.mrb[0].mxu0
  %278 = vmatprep.mubr.bf16.mxu0 0
  %279 = vmatmul.mubr.bf16.gmra.mrb[0].mxu0 %v129
  %v280 = vpop.f32.mrb[0].mxu0
  %v281 = vadd.f32 %v78, %v280
  %v282 = vpop.f32.mrb[0].mxu0
  %v283 = vpop.f32.mrb[0].mxu0
  %v284 = vadd.f32 %v78, %v283
  %v285 = vpop.f32.mrb[0].mxu0
  %286 = vmatprep.mubr.bf16.mxu0 0
  %287 = vmatmul.mubr.bf16.gmra.mrb[0].mxu0 %v132
  %v288 = vpop.f32.mrb[0].mxu0
  %v289 = vadd.f32 %v78, %v288
  %v290 = vpop.f32.mrb[0].mxu0
  %v291 = vpop.f32.mrb[0].mxu0
  %v292 = vadd.f32 %v78, %v291
  %v293 = vpop.f32.mrb[0].mxu0
  %294 = vdwg.mxu0
  %vm295 = vcmp.gt.f32.partialorder %v169, 0.0
  %vm296 = vcmp.gt.f32.partialorder %v172, 0.0
  %vm297 = vcmp.gt.f32.partialorder %v177, 0.0
  %vm298 = vcmp.gt.f32.partialorder %v180, 0.0
  %vm299 = vcmp.gt.f32.partialorder %v185, 0.0
  %vm300 = vcmp.gt.f32.partialorder %v188, 0.0
  %vm301 = vcmp.gt.f32.partialorder %v193, 0.0
  %vm302 = vcmp.gt.f32.partialorder %v196, 0.0
  %vm303 = vcmp.gt.f32.partialorder %v201, 0.0
  %vm304 = vcmp.gt.f32.partialorder %v204, 0.0
  %vm305 = vcmp.gt.f32.partialorder %v209, 0.0
  %vm306 = vcmp.gt.f32.partialorder %v212, 0.0
  %vm307 = vcmp.gt.f32.partialorder %v217, 0.0
  %vm308 = vcmp.gt.f32.partialorder %v220, 0.0
  %vm309 = vcmp.gt.f32.partialorder %v225, 0.0
  %vm310 = vcmp.gt.f32.partialorder %v228, 0.0
  %vm311 = vcmp.gt.f32.partialorder %v233, 0.0
  %vm312 = vcmp.gt.f32.partialorder %v236, 0.0
  %vm313 = vcmp.gt.f32.partialorder %v241, 0.0
  %vm314 = vcmp.gt.f32.partialorder %v244, 0.0
  %vm315 = vcmp.gt.f32.partialorder %v249, 0.0
  %vm316 = vcmp.gt.f32.partialorder %v252, 0.0
  %vm317 = vcmp.gt.f32.partialorder %v257, 0.0
  %vm318 = vcmp.gt.f32.partialorder %v260, 0.0
  %vm319 = vcmp.gt.f32.partialorder %v265, 0.0
  %vm320 = vcmp.gt.f32.partialorder %v268, 0.0
  %vm321 = vcmp.gt.f32.partialorder %v273, 0.0
  %vm322 = vcmp.gt.f32.partialorder %v276, 0.0
  %vm323 = vcmp.gt.f32.partialorder %v281, 0.0
  %vm324 = vcmp.gt.f32.partialorder %v284, 0.0
  %vm325 = vcmp.gt.f32.partialorder %v289, 0.0
  %vm326 = vcmp.gt.f32.partialorder %v292, 0.0
  %v327 = vmul.f32 %v169, 0.2
  %v328 = vmul.f32 %v172, 0.2
  %v329 = vmul.f32 %v177, 0.2
  %v330 = vmul.f32 %v180, 0.2
  %v331 = vmul.f32 %v185, 0.2
  %v332 = vmul.f32 %v188, 0.2
  %v333 = vmul.f32 %v193, 0.2
  %v334 = vmul.f32 %v196, 0.2
  %v335 = vmul.f32 %v201, 0.2
  %v336 = vmul.f32 %v204, 0.2
  %v337 = vmul.f32 %v209, 0.2
  %v338 = vmul.f32 %v212, 0.2
  %v339 = vmul.f32 %v217, 0.2
  %v340 = vmul.f32 %v220, 0.2
  %v341 = vmul.f32 %v225, 0.2
  %v342 = vmul.f32 %v228, 0.2
  %v343 = vmul.f32 %v233, 0.2
  %v344 = vmul.f32 %v236, 0.2
  %v345 = vmul.f32 %v241, 0.2
  %v346 = vmul.f32 %v244, 0.2
  %v347 = vmul.f32 %v249, 0.2
  %v348 = vmul.f32 %v252, 0.2
  %v349 = vmul.f32 %v257, 0.2
  %v350 = vmul.f32 %v260, 0.2
  %v351 = vmul.f32 %v265, 0.2
  %v352 = vmul.f32 %v268, 0.2
  %v353 = vmul.f32 %v273, 0.2
  %v354 = vmul.f32 %v276, 0.2
  %v355 = vmul.f32 %v281, 0.2
  %v356 = vmul.f32 %v284, 0.2
  %v357 = vmul.f32 %v289, 0.2
  %v358 = vmul.f32 %v292, 0.2
  %v359 = vsel %vm295, %v169, %v327
  %v360 = vsel %vm296, %v172, %v328
  %v361 = vsel %vm297, %v177, %v329
  %v362 = vsel %vm298, %v180, %v330
  %v363 = vsel %vm299, %v185, %v331
  %v364 = vsel %vm300, %v188, %v332
  %v365 = vsel %vm301, %v193, %v333
  %v366 = vsel %vm302, %v196, %v334
  %v367 = vsel %vm303, %v201, %v335
  %v368 = vsel %vm304, %v204, %v336
  %v369 = vsel %vm305, %v209, %v337
  %v370 = vsel %vm306, %v212, %v338
  %v371 = vsel %vm307, %v217, %v339
  %v372 = vsel %vm308, %v220, %v340
  %v373 = vsel %vm309, %v225, %v341
  %v374 = vsel %vm310, %v228, %v342
  %v375 = vsel %vm311, %v233, %v343
  %v376 = vsel %vm312, %v236, %v344
  %v377 = vsel %vm313, %v241, %v345
  %v378 = vsel %vm314, %v244, %v346
  %v379 = vsel %vm315, %v249, %v347
  %v380 = vsel %vm316, %v252, %v348
  %v381 = vsel %vm317, %v257, %v349
  %v382 = vsel %vm318, %v260, %v350
  %v383 = vsel %vm319, %v265, %v351
  %v384 = vsel %vm320, %v268, %v352
  %v385 = vsel %vm321, %v273, %v353
  %v386 = vsel %vm322, %v276, %v354
  %v387 = vsel %vm323, %v281, %v355
  %v388 = vsel %vm324, %v284, %v356
  %v389 = vsel %vm325, %v289, %v357
  %v390 = vsel %vm326, %v292, %v358
  %v391 = vpack.c.bf16 %v360, %v359
  %v392 = vpack.c.bf16 %v362, %v361
  %v393 = vpack.c.bf16 %v364, %v363
  %v394 = vpack.c.bf16 %v366, %v365
  %v395 = vpack.c.bf16 %v368, %v367
  %v396 = vpack.c.bf16 %v370, %v369
  %v397 = vpack.c.bf16 %v372, %v371
  %v398 = vpack.c.bf16 %v374, %v373
  %v399 = vpack.c.bf16 %v376, %v375
  %v400 = vpack.c.bf16 %v378, %v377
  %v401 = vpack.c.bf16 %v380, %v379
  %v402 = vpack.c.bf16 %v382, %v381
  %v403 = vpack.c.bf16 %v384, %v383
  %v404 = vpack.c.bf16 %v386, %v385
  %v405 = vpack.c.bf16 %v388, %v387
  %v406 = vpack.c.bf16 %v390, %v389
  %v407 = vld [vmem:[%s2] sm:$0xf]
  %v408 = vld [vmem:[%s2 + $0x4] sm:$0xf]
  %v409 = vld [vmem:[%s2 + $0x8] sm:$0xf]
  %v410 = vld [vmem:[%s2 + $0xc] sm:$0xf]
  %v411 = vld [vmem:[%s4 + $0x1] sm:$0x1]
  %v412 = vlaneseq
  %v413 = vshrl.u32 %v412, 7
  %v414 = vsub.s32 0, %v413
  %v415 = vrot.slane %v411, %v414
  %v420 = vunpack.c.l.b16 %v407
  %v421 = vunpack.c.l.b16 %v408
  %v422 = vunpack.c.l.b16 %v409
  %v423 = vunpack.c.l.b16 %v410
  %v424 = vpack.c.b16 %v421, %v420
  %v425 = vpack.c.b16 %v423, %v422
  %vm428 = vcmask 261120
  %v430 = vsel %vm428, %v391, 0
  %v433 = vsel %vm428, %v392, 0
  %v436 = vsel %vm428, %v393, 0
  %v439 = vsel %vm428, %v394, 0
  %v442 = vsel %vm428, %v395, 0
  %v445 = vsel %vm428, %v396, 0
  %v448 = vsel %vm428, %v397, 0
  %v451 = vsel %vm428, %v398, 0
  %v454 = vsel %vm428, %v399, 0
  %v457 = vsel %vm428, %v400, 0
  %v460 = vsel %vm428, %v401, 0
  %v463 = vsel %vm428, %v402, 0
  %v466 = vsel %vm428, %v403, 0
  %v469 = vsel %vm428, %v404, 0
  %v472 = vsel %vm428, %v405, 0
  %v475 = vsel %vm428, %v406, 0
  %477 = vmatprep.subr.bf16.mxu0 0
  %478 = vmatpush1.bf16.msra.mxu0 %v424
  %479 = vmatprep.subr.bf16.mxu0 0
  %480 = vmatpush1.bf16.msra.mxu0 %v425
  %481 = vmatprep.subr.bf16.mxu0 0
  %482 = vmatpush1.bf16.msra.mxu0 0
  %483 = vmatprep.subr.bf16.mxu0 0
  %484 = vmatpush1.bf16.msra.mxu0 0
  %485 = vmatprep.subr.bf16.mxu0 0
  %486 = vmatpush1.bf16.msra.mxu0 0
  %487 = vmatprep.subr.bf16.mxu0 0
  %488 = vmatpush1.bf16.msra.mxu0 0
  %489 = vmatprep.subr.bf16.mxu0 0
  %490 = vmatpush1.bf16.msra.mxu0 0
  %491 = vmatprep.subr.bf16.mxu0 0
  %492 = vmatpush1.bf16.msra.mxu0 0
  %493 = vmatprep.subr.bf16.mxu0 0
  %494 = vmatpush1.bf16.msra.mxu0 0
  %495 = vmatprep.subr.bf16.mxu0 0
  %496 = vmatpush1.bf16.msra.mxu0 0
  %497 = vmatprep.subr.bf16.mxu0 0
  %498 = vmatpush1.bf16.msra.mxu0 0
  %499 = vmatprep.subr.bf16.mxu0 0
  %500 = vmatpush1.bf16.msra.mxu0 0
  %501 = vmatprep.subr.bf16.mxu0 0
  %502 = vmatpush1.bf16.msra.mxu0 0
  %503 = vmatprep.subr.bf16.mxu0 0
  %504 = vmatpush1.bf16.msra.mxu0 0
  %505 = vmatprep.subr.bf16.mxu0 0
  %506 = vmatpush1.bf16.msra.mxu0 0
  %507 = vmatprep.subr.bf16.mxu0 0
  %508 = vmatpush1.bf16.msra.mxu0 0
  %509 = vmatprep.mubr.bf16.mxu0 0
  %510 = vmatmul.mubr.bf16.gmra.mrb[0].mxu0 %v430
  %v511 = vpop.f32.mrb[0].mxu0
  %v512 = vadd.f32 %v415, %v511
  %v513 = vpop.f32.mrb[0].mxu0
  %v514 = vpop.f32.mrb[0].mxu0
  %v515 = vadd.f32 %v415, %v514
  %v516 = vpop.f32.mrb[0].mxu0
  %517 = vmatprep.mubr.bf16.mxu0 0
  %518 = vmatmul.mubr.bf16.gmra.mrb[0].mxu0 %v433
  %v519 = vpop.f32.mrb[0].mxu0
  %v520 = vadd.f32 %v415, %v519
  %v521 = vpop.f32.mrb[0].mxu0
  %v522 = vpop.f32.mrb[0].mxu0
  %v523 = vadd.f32 %v415, %v522
  %v524 = vpop.f32.mrb[0].mxu0
  %525 = vmatprep.mubr.bf16.mxu0 0
  %526 = vmatmul.mubr.bf16.gmra.mrb[0].mxu0 %v436
  %v527 = vpop.f32.mrb[0].mxu0
  %v528 = vadd.f32 %v415, %v527
  %v529 = vpop.f32.mrb[0].mxu0
  %v530 = vpop.f32.mrb[0].mxu0
  %v531 = vadd.f32 %v415, %v530
  %v532 = vpop.f32.mrb[0].mxu0
  %533 = vmatprep.mubr.bf16.mxu0 0
  %534 = vmatmul.mubr.bf16.gmra.mrb[0].mxu0 %v439
  %v535 = vpop.f32.mrb[0].mxu0
  %v536 = vadd.f32 %v415, %v535
  %v537 = vpop.f32.mrb[0].mxu0
  %v538 = vpop.f32.mrb[0].mxu0
  %v539 = vadd.f32 %v415, %v538
  %v540 = vpop.f32.mrb[0].mxu0
  %541 = vmatprep.mubr.bf16.mxu0 0
  %542 = vmatmul.mubr.bf16.gmra.mrb[0].mxu0 %v442
  %v543 = vpop.f32.mrb[0].mxu0
  %v544 = vadd.f32 %v415, %v543
  %v545 = vpop.f32.mrb[0].mxu0
  %v546 = vpop.f32.mrb[0].mxu0
  %v547 = vadd.f32 %v415, %v546
  %v548 = vpop.f32.mrb[0].mxu0
  %549 = vmatprep.mubr.bf16.mxu0 0
  %550 = vmatmul.mubr.bf16.gmra.mrb[0].mxu0 %v445
  %v551 = vpop.f32.mrb[0].mxu0
  %v552 = vadd.f32 %v415, %v551
  %v553 = vpop.f32.mrb[0].mxu0
  %v554 = vpop.f32.mrb[0].mxu0
  %v555 = vadd.f32 %v415, %v554
  %v556 = vpop.f32.mrb[0].mxu0
  %557 = vmatprep.mubr.bf16.mxu0 0
  %558 = vmatmul.mubr.bf16.gmra.mrb[0].mxu0 %v448
  %v559 = vpop.f32.mrb[0].mxu0
  %v560 = vadd.f32 %v415, %v559
  %v561 = vpop.f32.mrb[0].mxu0
  %v562 = vpop.f32.mrb[0].mxu0
  %v563 = vadd.f32 %v415, %v562
  %v564 = vpop.f32.mrb[0].mxu0
  %565 = vmatprep.mubr.bf16.mxu0 0
  %566 = vmatmul.mubr.bf16.gmra.mrb[0].mxu0 %v451
  %v567 = vpop.f32.mrb[0].mxu0
  %v568 = vadd.f32 %v415, %v567
  %v569 = vpop.f32.mrb[0].mxu0
  %v570 = vpop.f32.mrb[0].mxu0
  %v571 = vadd.f32 %v415, %v570
  %v572 = vpop.f32.mrb[0].mxu0
  %573 = vmatprep.mubr.bf16.mxu0 0
  %574 = vmatmul.mubr.bf16.gmra.mrb[0].mxu0 %v454
  %v575 = vpop.f32.mrb[0].mxu0
  %v576 = vadd.f32 %v415, %v575
  %v577 = vpop.f32.mrb[0].mxu0
  %v578 = vpop.f32.mrb[0].mxu0
  %v579 = vadd.f32 %v415, %v578
  %v580 = vpop.f32.mrb[0].mxu0
  %581 = vmatprep.mubr.bf16.mxu0 0
  %582 = vmatmul.mubr.bf16.gmra.mrb[0].mxu0 %v457
  %v583 = vpop.f32.mrb[0].mxu0
  %v584 = vadd.f32 %v415, %v583
  %v585 = vpop.f32.mrb[0].mxu0
  %v586 = vpop.f32.mrb[0].mxu0
  %v587 = vadd.f32 %v415, %v586
  %v588 = vpop.f32.mrb[0].mxu0
  %589 = vmatprep.mubr.bf16.mxu0 0
  %590 = vmatmul.mubr.bf16.gmra.mrb[0].mxu0 %v460
  %v591 = vpop.f32.mrb[0].mxu0
  %v592 = vadd.f32 %v415, %v591
  %v593 = vpop.f32.mrb[0].mxu0
  %v594 = vpop.f32.mrb[0].mxu0
  %v595 = vadd.f32 %v415, %v594
  %v596 = vpop.f32.mrb[0].mxu0
  %597 = vmatprep.mubr.bf16.mxu0 0
  %598 = vmatmul.mubr.bf16.gmra.mrb[0].mxu0 %v463
  %v599 = vpop.f32.mrb[0].mxu0
  %v600 = vadd.f32 %v415, %v599
  %v601 = vpop.f32.mrb[0].mxu0
  %v602 = vpop.f32.mrb[0].mxu0
  %v603 = vadd.f32 %v415, %v602
  %v604 = vpop.f32.mrb[0].mxu0
  %605 = vmatprep.mubr.bf16.mxu0 0
  %606 = vmatmul.mubr.bf16.gmra.mrb[0].mxu0 %v466
  %v607 = vpop.f32.mrb[0].mxu0
  %v608 = vadd.f32 %v415, %v607
  %v609 = vpop.f32.mrb[0].mxu0
  %v610 = vpop.f32.mrb[0].mxu0
  %v611 = vadd.f32 %v415, %v610
  %v612 = vpop.f32.mrb[0].mxu0
  %613 = vmatprep.mubr.bf16.mxu0 0
  %614 = vmatmul.mubr.bf16.gmra.mrb[0].mxu0 %v469
  %v615 = vpop.f32.mrb[0].mxu0
  %v616 = vadd.f32 %v415, %v615
  %v617 = vpop.f32.mrb[0].mxu0
  %v618 = vpop.f32.mrb[0].mxu0
  %v619 = vadd.f32 %v415, %v618
  %v620 = vpop.f32.mrb[0].mxu0
  %621 = vmatprep.mubr.bf16.mxu0 0
  %622 = vmatmul.mubr.bf16.gmra.mrb[0].mxu0 %v472
  %v623 = vpop.f32.mrb[0].mxu0
  %v624 = vadd.f32 %v415, %v623
  %v625 = vpop.f32.mrb[0].mxu0
  %v626 = vpop.f32.mrb[0].mxu0
  %v627 = vadd.f32 %v415, %v626
  %v628 = vpop.f32.mrb[0].mxu0
  %629 = vmatprep.mubr.bf16.mxu0 0
  %630 = vmatmul.mubr.bf16.gmra.mrb[0].mxu0 %v475
  %v631 = vpop.f32.mrb[0].mxu0
  %v632 = vadd.f32 %v415, %v631
  %v633 = vpop.f32.mrb[0].mxu0
  %v634 = vpop.f32.mrb[0].mxu0
  %v635 = vadd.f32 %v415, %v634
  %v636 = vpop.f32.mrb[0].mxu0
  %637 = vdwg.mxu0
  %vm638 = vcmp.gt.f32.partialorder %v512, 0.0
  %vm639 = vcmp.gt.f32.partialorder %v515, 0.0
  %vm640 = vcmp.gt.f32.partialorder %v520, 0.0
  %vm641 = vcmp.gt.f32.partialorder %v523, 0.0
  %vm642 = vcmp.gt.f32.partialorder %v528, 0.0
  %vm643 = vcmp.gt.f32.partialorder %v531, 0.0
  %vm644 = vcmp.gt.f32.partialorder %v536, 0.0
  %vm645 = vcmp.gt.f32.partialorder %v539, 0.0
  %vm646 = vcmp.gt.f32.partialorder %v544, 0.0
  %vm647 = vcmp.gt.f32.partialorder %v547, 0.0
  %vm648 = vcmp.gt.f32.partialorder %v552, 0.0
  %vm649 = vcmp.gt.f32.partialorder %v555, 0.0
  %vm650 = vcmp.gt.f32.partialorder %v560, 0.0
  %vm651 = vcmp.gt.f32.partialorder %v563, 0.0
  %vm652 = vcmp.gt.f32.partialorder %v568, 0.0
  %vm653 = vcmp.gt.f32.partialorder %v571, 0.0
  %vm654 = vcmp.gt.f32.partialorder %v576, 0.0
  %vm655 = vcmp.gt.f32.partialorder %v579, 0.0
  %vm656 = vcmp.gt.f32.partialorder %v584, 0.0
  %vm657 = vcmp.gt.f32.partialorder %v587, 0.0
  %vm658 = vcmp.gt.f32.partialorder %v592, 0.0
  %vm659 = vcmp.gt.f32.partialorder %v595, 0.0
  %vm660 = vcmp.gt.f32.partialorder %v600, 0.0
  %vm661 = vcmp.gt.f32.partialorder %v603, 0.0
  %vm662 = vcmp.gt.f32.partialorder %v608, 0.0
  %vm663 = vcmp.gt.f32.partialorder %v611, 0.0
  %vm664 = vcmp.gt.f32.partialorder %v616, 0.0
  %vm665 = vcmp.gt.f32.partialorder %v619, 0.0
  %vm666 = vcmp.gt.f32.partialorder %v624, 0.0
  %vm667 = vcmp.gt.f32.partialorder %v627, 0.0
  %vm668 = vcmp.gt.f32.partialorder %v632, 0.0
  %vm669 = vcmp.gt.f32.partialorder %v635, 0.0
  %v670 = vmul.f32 %v512, 0.2
  %v671 = vmul.f32 %v515, 0.2
  %v672 = vmul.f32 %v520, 0.2
  %v673 = vmul.f32 %v523, 0.2
  %v674 = vmul.f32 %v528, 0.2
  %v675 = vmul.f32 %v531, 0.2
  %v676 = vmul.f32 %v536, 0.2
  %v677 = vmul.f32 %v539, 0.2
  %v678 = vmul.f32 %v544, 0.2
  %v679 = vmul.f32 %v547, 0.2
  %v680 = vmul.f32 %v552, 0.2
  %v681 = vmul.f32 %v555, 0.2
  %v682 = vmul.f32 %v560, 0.2
  %v683 = vmul.f32 %v563, 0.2
  %v684 = vmul.f32 %v568, 0.2
  %v685 = vmul.f32 %v571, 0.2
  %v686 = vmul.f32 %v576, 0.2
  %v687 = vmul.f32 %v579, 0.2
  %v688 = vmul.f32 %v584, 0.2
  %v689 = vmul.f32 %v587, 0.2
  %v690 = vmul.f32 %v592, 0.2
  %v691 = vmul.f32 %v595, 0.2
  %v692 = vmul.f32 %v600, 0.2
  %v693 = vmul.f32 %v603, 0.2
  %v694 = vmul.f32 %v608, 0.2
  %v695 = vmul.f32 %v611, 0.2
  %v696 = vmul.f32 %v616, 0.2
  %v697 = vmul.f32 %v619, 0.2
  %v698 = vmul.f32 %v624, 0.2
  %v699 = vmul.f32 %v627, 0.2
  %v700 = vmul.f32 %v632, 0.2
  %v701 = vmul.f32 %v635, 0.2
  %v702 = vsel %vm638, %v512, %v670
  %v703 = vsel %vm639, %v515, %v671
  %v704 = vsel %vm640, %v520, %v672
  %v705 = vsel %vm641, %v523, %v673
  %v706 = vsel %vm642, %v528, %v674
  %v707 = vsel %vm643, %v531, %v675
  %v708 = vsel %vm644, %v536, %v676
  %v709 = vsel %vm645, %v539, %v677
  %v710 = vsel %vm646, %v544, %v678
  %v711 = vsel %vm647, %v547, %v679
  %v712 = vsel %vm648, %v552, %v680
  %v713 = vsel %vm649, %v555, %v681
  %v714 = vsel %vm650, %v560, %v682
  %v715 = vsel %vm651, %v563, %v683
  %v716 = vsel %vm652, %v568, %v684
  %v717 = vsel %vm653, %v571, %v685
  %v718 = vsel %vm654, %v576, %v686
  %v719 = vsel %vm655, %v579, %v687
  %v720 = vsel %vm656, %v584, %v688
  %v721 = vsel %vm657, %v587, %v689
  %v722 = vsel %vm658, %v592, %v690
  %v723 = vsel %vm659, %v595, %v691
  %v724 = vsel %vm660, %v600, %v692
  %v725 = vsel %vm661, %v603, %v693
  %v726 = vsel %vm662, %v608, %v694
  %v727 = vsel %vm663, %v611, %v695
  %v728 = vsel %vm664, %v616, %v696
  %v729 = vsel %vm665, %v619, %v697
  %v730 = vsel %vm666, %v624, %v698
  %v731 = vsel %vm667, %v627, %v699
  %v732 = vsel %vm668, %v632, %v700
  %v733 = vsel %vm669, %v635, %v701
  %v734 = vpack.c.bf16 %v703, %v702
  %v735 = vpack.c.bf16 %v705, %v704
  %v736 = vpack.c.bf16 %v707, %v706
  %v737 = vpack.c.bf16 %v709, %v708
  %v738 = vpack.c.bf16 %v711, %v710
  %v739 = vpack.c.bf16 %v713, %v712
  %v740 = vpack.c.bf16 %v715, %v714
  %v741 = vpack.c.bf16 %v717, %v716
  %v742 = vpack.c.bf16 %v719, %v718
  %v743 = vpack.c.bf16 %v721, %v720
  %v744 = vpack.c.bf16 %v723, %v722
  %v745 = vpack.c.bf16 %v725, %v724
  %v746 = vpack.c.bf16 %v727, %v726
  %v747 = vpack.c.bf16 %v729, %v728
  %v748 = vpack.c.bf16 %v731, %v730
  %v749 = vpack.c.bf16 %v733, %v732
  %v750 = vld [vmem:[%s3] sm:$0xf]
  %v751 = vld [vmem:[%s3 + $0x4] sm:$0xf]
  %v752 = vld [vmem:[%s3 + $0x8] sm:$0xf]
  %v753 = vld [vmem:[%s3 + $0xc] sm:$0xf]
  %v754 = vld [vmem:[%s3 + $0x10] sm:$0xf]
  %v755 = vld [vmem:[%s3 + $0x14] sm:$0xf]
  %v756 = vld [vmem:[%s3 + $0x18] sm:$0xf]
  %v757 = vld [vmem:[%s3 + $0x1c] sm:$0xf]
  %v758 = vld [vmem:[%s4 + $0x2] sm:$0x1]
  %v759 = vlaneseq
  %v760 = vshrl.u32 %v759, 7
  %v761 = vsub.s32 0, %v760
  %v762 = vrot.slane %v758, %v761
  %v771 = vunpack.c.l.b16 %v750
  %v772 = vunpack.c.l.b16 %v751
  %v773 = vunpack.c.l.b16 %v752
  %v774 = vunpack.c.l.b16 %v753
  %v775 = vunpack.c.l.b16 %v754
  %v776 = vunpack.c.l.b16 %v755
  %v777 = vunpack.c.l.b16 %v756
  %v778 = vunpack.c.l.b16 %v757
  %v779 = vpack.c.b16 %v772, %v771
  %v780 = vpack.c.b16 %v774, %v773
  %v781 = vpack.c.b16 %v776, %v775
  %v782 = vpack.c.b16 %v778, %v777
  %vm787 = vcmask 523264
  %v789 = vsel %vm787, %v734, 0
  %v792 = vsel %vm787, %v735, 0
  %v795 = vsel %vm787, %v736, 0
  %v798 = vsel %vm787, %v737, 0
  %v801 = vsel %vm787, %v738, 0
  %v804 = vsel %vm787, %v739, 0
  %v807 = vsel %vm787, %v740, 0
  %v810 = vsel %vm787, %v741, 0
  %v813 = vsel %vm787, %v742, 0
  %v816 = vsel %vm787, %v743, 0
  %v819 = vsel %vm787, %v744, 0
  %v822 = vsel %vm787, %v745, 0
  %v825 = vsel %vm787, %v746, 0
  %v828 = vsel %vm787, %v747, 0
  %v831 = vsel %vm787, %v748, 0
  %v834 = vsel %vm787, %v749, 0
  %836 = vmatprep.subr.bf16.mxu0 0
  %837 = vmatpush1.bf16.msra.mxu0 %v779
  %838 = vmatprep.subr.bf16.mxu0 0
  %839 = vmatpush1.bf16.msra.mxu0 %v780
  %840 = vmatprep.subr.bf16.mxu0 0
  %841 = vmatpush1.bf16.msra.mxu0 %v781
  %842 = vmatprep.subr.bf16.mxu0 0
  %843 = vmatpush1.bf16.msra.mxu0 %v782
  %844 = vmatprep.subr.bf16.mxu0 0
  %845 = vmatpush1.bf16.msra.mxu0 0
  %846 = vmatprep.subr.bf16.mxu0 0
  %847 = vmatpush1.bf16.msra.mxu0 0
  %848 = vmatprep.subr.bf16.mxu0 0
  %849 = vmatpush1.bf16.msra.mxu0 0
  %850 = vmatprep.subr.bf16.mxu0 0
  %851 = vmatpush1.bf16.msra.mxu0 0
  %852 = vmatprep.subr.bf16.mxu0 0
  %853 = vmatpush1.bf16.msra.mxu0 0
  %854 = vmatprep.subr.bf16.mxu0 0
  %855 = vmatpush1.bf16.msra.mxu0 0
  %856 = vmatprep.subr.bf16.mxu0 0
  %857 = vmatpush1.bf16.msra.mxu0 0
  %858 = vmatprep.subr.bf16.mxu0 0
  %859 = vmatpush1.bf16.msra.mxu0 0
  %860 = vmatprep.subr.bf16.mxu0 0
  %861 = vmatpush1.bf16.msra.mxu0 0
  %862 = vmatprep.subr.bf16.mxu0 0
  %863 = vmatpush1.bf16.msra.mxu0 0
  %864 = vmatprep.subr.bf16.mxu0 0
  %865 = vmatpush1.bf16.msra.mxu0 0
  %866 = vmatprep.subr.bf16.mxu0 0
  %867 = vmatpush1.bf16.msra.mxu0 0
  %868 = vmatprep.mubr.bf16.mxu0 0
  %869 = vmatmul.mubr.bf16.gmra.mrb[0].mxu0 %v789
  %v870 = vpop.f32.mrb[0].mxu0
  %v871 = vadd.f32 %v762, %v870
  %v872 = vpop.f32.mrb[0].mxu0
  %v873 = vpop.f32.mrb[0].mxu0
  %v874 = vadd.f32 %v762, %v873
  %v875 = vpop.f32.mrb[0].mxu0
  %876 = vmatprep.mubr.bf16.mxu0 0
  %877 = vmatmul.mubr.bf16.gmra.mrb[0].mxu0 %v792
  %v878 = vpop.f32.mrb[0].mxu0
  %v879 = vadd.f32 %v762, %v878
  %v880 = vpop.f32.mrb[0].mxu0
  %v881 = vpop.f32.mrb[0].mxu0
  %v882 = vadd.f32 %v762, %v881
  %v883 = vpop.f32.mrb[0].mxu0
  %884 = vmatprep.mubr.bf16.mxu0 0
  %885 = vmatmul.mubr.bf16.gmra.mrb[0].mxu0 %v795
  %v886 = vpop.f32.mrb[0].mxu0
  %v887 = vadd.f32 %v762, %v886
  %v888 = vpop.f32.mrb[0].mxu0
  %v889 = vpop.f32.mrb[0].mxu0
  %v890 = vadd.f32 %v762, %v889
  %v891 = vpop.f32.mrb[0].mxu0
  %892 = vmatprep.mubr.bf16.mxu0 0
  %893 = vmatmul.mubr.bf16.gmra.mrb[0].mxu0 %v798
  %v894 = vpop.f32.mrb[0].mxu0
  %v895 = vadd.f32 %v762, %v894
  %v896 = vpop.f32.mrb[0].mxu0
  %v897 = vpop.f32.mrb[0].mxu0
  %v898 = vadd.f32 %v762, %v897
  %v899 = vpop.f32.mrb[0].mxu0
  %900 = vmatprep.mubr.bf16.mxu0 0
  %901 = vmatmul.mubr.bf16.gmra.mrb[0].mxu0 %v801
  %v902 = vpop.f32.mrb[0].mxu0
  %v903 = vadd.f32 %v762, %v902
  %v904 = vpop.f32.mrb[0].mxu0
  %v905 = vpop.f32.mrb[0].mxu0
  %v906 = vadd.f32 %v762, %v905
  %v907 = vpop.f32.mrb[0].mxu0
  %908 = vmatprep.mubr.bf16.mxu0 0
  %909 = vmatmul.mubr.bf16.gmra.mrb[0].mxu0 %v804
  %v910 = vpop.f32.mrb[0].mxu0
  %v911 = vadd.f32 %v762, %v910
  %v912 = vpop.f32.mrb[0].mxu0
  %v913 = vpop.f32.mrb[0].mxu0
  %v914 = vadd.f32 %v762, %v913
  %v915 = vpop.f32.mrb[0].mxu0
  %916 = vmatprep.mubr.bf16.mxu0 0
  %917 = vmatmul.mubr.bf16.gmra.mrb[0].mxu0 %v807
  %v918 = vpop.f32.mrb[0].mxu0
  %v919 = vadd.f32 %v762, %v918
  %v920 = vpop.f32.mrb[0].mxu0
  %v921 = vpop.f32.mrb[0].mxu0
  %v922 = vadd.f32 %v762, %v921
  %v923 = vpop.f32.mrb[0].mxu0
  %924 = vmatprep.mubr.bf16.mxu0 0
  %925 = vmatmul.mubr.bf16.gmra.mrb[0].mxu0 %v810
  %v926 = vpop.f32.mrb[0].mxu0
  %v927 = vadd.f32 %v762, %v926
  %v928 = vpop.f32.mrb[0].mxu0
  %v929 = vpop.f32.mrb[0].mxu0
  %v930 = vadd.f32 %v762, %v929
  %v931 = vpop.f32.mrb[0].mxu0
  %932 = vmatprep.mubr.bf16.mxu0 0
  %933 = vmatmul.mubr.bf16.gmra.mrb[0].mxu0 %v813
  %v934 = vpop.f32.mrb[0].mxu0
  %v935 = vadd.f32 %v762, %v934
  %v936 = vpop.f32.mrb[0].mxu0
  %v937 = vpop.f32.mrb[0].mxu0
  %v938 = vadd.f32 %v762, %v937
  %v939 = vpop.f32.mrb[0].mxu0
  %940 = vmatprep.mubr.bf16.mxu0 0
  %941 = vmatmul.mubr.bf16.gmra.mrb[0].mxu0 %v816
  %v942 = vpop.f32.mrb[0].mxu0
  %v943 = vadd.f32 %v762, %v942
  %v944 = vpop.f32.mrb[0].mxu0
  %v945 = vpop.f32.mrb[0].mxu0
  %v946 = vadd.f32 %v762, %v945
  %v947 = vpop.f32.mrb[0].mxu0
  %948 = vmatprep.mubr.bf16.mxu0 0
  %949 = vmatmul.mubr.bf16.gmra.mrb[0].mxu0 %v819
  %v950 = vpop.f32.mrb[0].mxu0
  %v951 = vadd.f32 %v762, %v950
  %v952 = vpop.f32.mrb[0].mxu0
  %v953 = vpop.f32.mrb[0].mxu0
  %v954 = vadd.f32 %v762, %v953
  %v955 = vpop.f32.mrb[0].mxu0
  %956 = vmatprep.mubr.bf16.mxu0 0
  %957 = vmatmul.mubr.bf16.gmra.mrb[0].mxu0 %v822
  %v958 = vpop.f32.mrb[0].mxu0
  %v959 = vadd.f32 %v762, %v958
  %v960 = vpop.f32.mrb[0].mxu0
  %v961 = vpop.f32.mrb[0].mxu0
  %v962 = vadd.f32 %v762, %v961
  %v963 = vpop.f32.mrb[0].mxu0
  %964 = vmatprep.mubr.bf16.mxu0 0
  %965 = vmatmul.mubr.bf16.gmra.mrb[0].mxu0 %v825
  %v966 = vpop.f32.mrb[0].mxu0
  %v967 = vadd.f32 %v762, %v966
  %v968 = vpop.f32.mrb[0].mxu0
  %v969 = vpop.f32.mrb[0].mxu0
  %v970 = vadd.f32 %v762, %v969
  %v971 = vpop.f32.mrb[0].mxu0
  %972 = vmatprep.mubr.bf16.mxu0 0
  %973 = vmatmul.mubr.bf16.gmra.mrb[0].mxu0 %v828
  %v974 = vpop.f32.mrb[0].mxu0
  %v975 = vadd.f32 %v762, %v974
  %v976 = vpop.f32.mrb[0].mxu0
  %v977 = vpop.f32.mrb[0].mxu0
  %v978 = vadd.f32 %v762, %v977
  %v979 = vpop.f32.mrb[0].mxu0
  %980 = vmatprep.mubr.bf16.mxu0 0
  %981 = vmatmul.mubr.bf16.gmra.mrb[0].mxu0 %v831
  %v982 = vpop.f32.mrb[0].mxu0
  %v983 = vadd.f32 %v762, %v982
  %v984 = vpop.f32.mrb[0].mxu0
  %v985 = vpop.f32.mrb[0].mxu0
  %v986 = vadd.f32 %v762, %v985
  %v987 = vpop.f32.mrb[0].mxu0
  %988 = vmatprep.mubr.bf16.mxu0 0
  %989 = vmatmul.mubr.bf16.gmra.mrb[0].mxu0 %v834
  %v990 = vpop.f32.mrb[0].mxu0
  %v991 = vadd.f32 %v762, %v990
  %v992 = vpop.f32.mrb[0].mxu0
  %v993 = vpop.f32.mrb[0].mxu0
  %v994 = vadd.f32 %v762, %v993
  %v995 = vpop.f32.mrb[0].mxu0
  %996 = vdwg.mxu0
  %v997 = vld [vmem:[%s5] sm:$0xff]
  %v998 = vld [vmem:[%s5 + $0x8] sm:$0xff]
  %v999 = vld [vmem:[%s5 + $0x10] sm:$0xff]
  %v1000 = vld [vmem:[%s5 + $0x18] sm:$0xff]
  %v1001 = vld [vmem:[%s5 + $0x20] sm:$0xff]
  %v1002 = vld [vmem:[%s5 + $0x28] sm:$0xff]
  %v1003 = vld [vmem:[%s5 + $0x30] sm:$0xff]
  %v1004 = vld [vmem:[%s5 + $0x38] sm:$0xff]
  %v1005 = vld [vmem:[%s5 + $0x40] sm:$0xff]
  %v1006 = vld [vmem:[%s5 + $0x48] sm:$0xff]
  %v1007 = vld [vmem:[%s5 + $0x50] sm:$0xff]
  %v1008 = vld [vmem:[%s5 + $0x58] sm:$0xff]
  %v1009 = vld [vmem:[%s5 + $0x60] sm:$0xff]
  %v1010 = vld [vmem:[%s5 + $0x68] sm:$0xff]
  %v1011 = vld [vmem:[%s5 + $0x70] sm:$0xff]
  %v1012 = vld [vmem:[%s5 + $0x78] sm:$0xff]
  %v1013 = vld [vmem:[%s5 + $0x80] sm:$0xff]
  %v1014 = vld [vmem:[%s5 + $0x88] sm:$0xff]
  %v1015 = vld [vmem:[%s5 + $0x90] sm:$0xff]
  %v1016 = vld [vmem:[%s5 + $0x98] sm:$0xff]
  %v1017 = vld [vmem:[%s5 + $0xa0] sm:$0xff]
  %v1018 = vld [vmem:[%s5 + $0xa8] sm:$0xff]
  %v1019 = vld [vmem:[%s5 + $0xb0] sm:$0xff]
  %v1020 = vld [vmem:[%s5 + $0xb8] sm:$0xff]
  %v1021 = vld [vmem:[%s5 + $0xc0] sm:$0xff]
  %v1022 = vld [vmem:[%s5 + $0xc8] sm:$0xff]
  %v1023 = vld [vmem:[%s5 + $0xd0] sm:$0xff]
  %v1024 = vld [vmem:[%s5 + $0xd8] sm:$0xff]
  %v1025 = vld [vmem:[%s5 + $0xe0] sm:$0xff]
  %v1026 = vld [vmem:[%s5 + $0xe8] sm:$0xff]
  %v1027 = vld [vmem:[%s5 + $0xf0] sm:$0xff]
  %v1028 = vld [vmem:[%s5 + $0xf8] sm:$0xff]
  %v1029 = vadd.f32 %v997, %v871
  %v1030 = vadd.f32 %v998, %v874
  %v1031 = vadd.f32 %v999, %v879
  %v1032 = vadd.f32 %v1000, %v882
  %v1033 = vadd.f32 %v1001, %v887
  %v1034 = vadd.f32 %v1002, %v890
  %v1035 = vadd.f32 %v1003, %v895
  %v1036 = vadd.f32 %v1004, %v898
  %v1037 = vadd.f32 %v1005, %v903
  %v1038 = vadd.f32 %v1006, %v906
  %v1039 = vadd.f32 %v1007, %v911
  %v1040 = vadd.f32 %v1008, %v914
  %v1041 = vadd.f32 %v1009, %v919
  %v1042 = vadd.f32 %v1010, %v922
  %v1043 = vadd.f32 %v1011, %v927
  %v1044 = vadd.f32 %v1012, %v930
  %v1045 = vadd.f32 %v1013, %v935
  %v1046 = vadd.f32 %v1014, %v938
  %v1047 = vadd.f32 %v1015, %v943
  %v1048 = vadd.f32 %v1016, %v946
  %v1049 = vadd.f32 %v1017, %v951
  %v1050 = vadd.f32 %v1018, %v954
  %v1051 = vadd.f32 %v1019, %v959
  %v1052 = vadd.f32 %v1020, %v962
  %v1053 = vadd.f32 %v1021, %v967
  %v1054 = vadd.f32 %v1022, %v970
  %v1055 = vadd.f32 %v1023, %v975
  %v1056 = vadd.f32 %v1024, %v978
  %v1057 = vadd.f32 %v1025, %v983
  %v1058 = vadd.f32 %v1026, %v986
  %v1059 = vadd.f32 %v1027, %v991
  %v1060 = vadd.f32 %v1028, %v994
  %vm1061 = vcmask 64512
  %1062 = vst.msk [vmem:[%s6] sm:$0xff] %vm1061, %v1029
  %1063 = vst.msk [vmem:[%s6 + $0x8] sm:$0xff] %vm1061, %v1030
  %1064 = vst.msk [vmem:[%s6 + $0x10] sm:$0xff] %vm1061, %v1031
  %1065 = vst.msk [vmem:[%s6 + $0x18] sm:$0xff] %vm1061, %v1032
  %1066 = vst.msk [vmem:[%s6 + $0x20] sm:$0xff] %vm1061, %v1033
  %1067 = vst.msk [vmem:[%s6 + $0x28] sm:$0xff] %vm1061, %v1034
  %1068 = vst.msk [vmem:[%s6 + $0x30] sm:$0xff] %vm1061, %v1035
  %1069 = vst.msk [vmem:[%s6 + $0x38] sm:$0xff] %vm1061, %v1036
  %1070 = vst.msk [vmem:[%s6 + $0x40] sm:$0xff] %vm1061, %v1037
  %1071 = vst.msk [vmem:[%s6 + $0x48] sm:$0xff] %vm1061, %v1038
  %1072 = vst.msk [vmem:[%s6 + $0x50] sm:$0xff] %vm1061, %v1039
  %1073 = vst.msk [vmem:[%s6 + $0x58] sm:$0xff] %vm1061, %v1040
  %1074 = vst.msk [vmem:[%s6 + $0x60] sm:$0xff] %vm1061, %v1041
  %1075 = vst.msk [vmem:[%s6 + $0x68] sm:$0xff] %vm1061, %v1042
  %1076 = vst.msk [vmem:[%s6 + $0x70] sm:$0xff] %vm1061, %v1043
  %1077 = vst.msk [vmem:[%s6 + $0x78] sm:$0xff] %vm1061, %v1044
  %1078 = vst.msk [vmem:[%s6 + $0x80] sm:$0xff] %vm1061, %v1045
  %1079 = vst.msk [vmem:[%s6 + $0x88] sm:$0xff] %vm1061, %v1046
  %1080 = vst.msk [vmem:[%s6 + $0x90] sm:$0xff] %vm1061, %v1047
  %1081 = vst.msk [vmem:[%s6 + $0x98] sm:$0xff] %vm1061, %v1048
  %1082 = vst.msk [vmem:[%s6 + $0xa0] sm:$0xff] %vm1061, %v1049
  %1083 = vst.msk [vmem:[%s6 + $0xa8] sm:$0xff] %vm1061, %v1050
  %1084 = vst.msk [vmem:[%s6 + $0xb0] sm:$0xff] %vm1061, %v1051
  %1085 = vst.msk [vmem:[%s6 + $0xb8] sm:$0xff] %vm1061, %v1052
  %1086 = vst.msk [vmem:[%s6 + $0xc0] sm:$0xff] %vm1061, %v1053
  %1087 = vst.msk [vmem:[%s6 + $0xc8] sm:$0xff] %vm1061, %v1054
  %1088 = vst.msk [vmem:[%s6 + $0xd0] sm:$0xff] %vm1061, %v1055
  %1089 = vst.msk [vmem:[%s6 + $0xd8] sm:$0xff] %vm1061, %v1056
  %1090 = vst.msk [vmem:[%s6 + $0xe0] sm:$0xff] %vm1061, %v1057
  %1091 = vst.msk [vmem:[%s6 + $0xe8] sm:$0xff] %vm1061, %v1058
  %1092 = vst.msk [vmem:[%s6 + $0xf0] sm:$0xff] %vm1061, %v1059
  %1093 = vst.msk [vmem:[%s6 + $0xf8] sm:$0xff] %vm1061, %v1060
  // Predicated region
  $region26: #{reconstructor_forward.1} parent=0 // pred_check
    _
  $region27: #{reconstructor_forward.1} parent=0 // pred_check_branch
    %1095 = sbr.rel (0) target = $region29
  $region28: #{reconstructor_forward.1} parent=0 // pred_region
    _
  $region29: #{reconstructor_forward.1} parent=0 // pred_fallthru
    _
  // Predicated region
  $region30: #{reconstructor_forward.1} parent=0 // pred_check
    _
  $region31: #{reconstructor_forward.1} parent=0 // pred_check_branch
    %1097 = sbr.rel (0) target = $region33
  $region32: #{reconstructor_forward.1} parent=0 // pred_region
    _
  $region33: #{reconstructor_forward.1} parent=0 // pred_fallthru
    _

</llo_original>
